<compile_context>
chip_gen: v5e
topology: v5e:2x2
jax: 0.10.0
libtpu: 0.0.40
codegen_flags: <defaults>
</compile_context>

<pallas_src>
import numpy as np
import jax
import jax.numpy as jnp
from jax.experimental import pallas as pl
from jax.experimental.pallas import tpu as pltpu


# ------------------------------ fused kernel --------------------------------

def _dc_gen_t2_kernel(z_ref, w1_ref, g1_ref, b1_ref, w2_ref, g2_ref, b2_ref,
                      w3_ref, s1_ref, s1t_ref, s2_ref, s2t_ref, m2_ref, p3_ref,
                      o_ref, x1_ref, x2_ref, r3_ref):
    f32 = jnp.float32
    eps = 1e-5
    B = z_ref.shape[0]                # batch
    n1 = float(16 * B)                # BN1 samples per channel (B*4*4)
    n2 = float(100 * B)               # BN2 samples per channel (B*10*10)

    # ---- layer 1: ConvT(R -> C1, k=4, s=1, p=0) on the 1x1 latent -----------
    # one matmul per output row i, stored directly in the (i, b)-row /
    # (j, cin)-col layout:  x1[(i,b),(j,c)] = sum_k z[b,k] * w1[k,c,i,j]
    z = z_ref[...]                                            # (B, R)
    for i in range(4):
        x1_ref[pl.ds(i * B, B), :] = jnp.dot(z, w1_ref[i],
                                             preferred_element_type=f32)
    x1 = x1_ref[...]                                          # (4B, 4*C1)

    # ---- BN1 (training-mode batch stats, biased var, eps=1e-5) + ReLU -------
    s1, s1t = s1_ref[...], s1t_ref[...]                      # (4C1,C1),(C1,4C1)
    mean = jnp.dot(jnp.sum(x1, axis=0, keepdims=True), s1,
                   preferred_element_type=f32) / n1          # (1, C1)
    cent = x1 - jnp.dot(mean, s1t, preferred_element_type=f32)
    var = jnp.dot(jnp.sum(cent * cent, axis=0, keepdims=True), s1,
                  preferred_element_type=f32) / n1
    scale = g1_ref[...] * jax.lax.rsqrt(var + eps)
    shift = b1_ref[...] - mean * scale
    a1 = jnp.maximum(
        x1 * jnp.dot(scale, s1t, preferred_element_type=f32)
        + jnp.dot(shift, s1t, preferred_element_type=f32), 0.0)      # (4B, 4C1)

    # ---- layer 2: ConvT(C1 -> C2, k=3, s=3, p=1): one matmul per kernel row -
    for di in range(3):
        x2_ref[pl.ds(di * 4 * B, 4 * B), :] = jnp.dot(
            a1, w2_ref[di], preferred_element_type=f32)
    x2 = x2_ref[...]                  # (12B, 10*C2); rows (di,i,b) <-> r=3i+di

    # ---- BN2 over the cropped 10x10 region (row mask drops r in {0,11}) -----
    m2 = m2_ref[...]                                         # (12B, 1) 0/1
    s2, s2t = s2_ref[...], s2t_ref[...]
    mean = jnp.dot(jnp.sum(x2 * m2, axis=0, keepdims=True), s2,
                   preferred_element_type=f32) / n2          # (1, C2)
    cent = (x2 - jnp.dot(mean, s2t, preferred_element_type=f32)) * m2
    var = jnp.dot(jnp.sum(cent * cent, axis=0, keepdims=True), s2,
                  preferred_element_type=f32) / n2
    scale = g2_ref[...] * jax.lax.rsqrt(var + eps)
    shift = b2_ref[...] - mean * scale
    a2 = jnp.maximum(
        x2 * jnp.dot(scale, s2t, preferred_element_type=f32)
        + jnp.dot(shift, s2t, preferred_element_type=f32), 0.0)      # (12B,10C2)

    # ---- layer 3: ConvT(C2 -> 1, k=3, s=3, p=1): one matmul per kernel row --
    for ei in range(3):
        r3_ref[pl.ds(ei * 12 * B, 12 * B), :] = jnp.dot(
            a2, w3_ref[ei], preferred_element_type=f32)

    # ---- final pixel gather (constant 0/1 matrix) + tanh epilogue -----------
    o_ref[...] = jnp.tanh(jnp.dot(p3_ref[...], r3_ref[...],
                                  preferred_element_type=f32))


# ------------------------------ host helpers --------------------------------

def _full(shape):
    # whole-array block, single grid step
    return pl.BlockSpec(shape, lambda i: (0,) * len(shape))


def prepare_params(params):
    """One-time re-layout of the PyTorch-format weights (outside the jitted fwd)."""
    w1, w2, w3 = params["w1"], params["w2"], params["w3"]
    R, C1 = w1.shape[0], w1.shape[1]
    C2 = w2.shape[1]

    # layer 1 (one (R, 4*C1) slab per output row i):
    # w1r[i][k, j*C1 + c] = w1[k, c, i, j]
    w1r = jnp.transpose(w1, (2, 0, 3, 1)).reshape(4, R, 4 * C1)

    # layer 2 (block-diagonal over j, dj interleaved, cols cropped to s in [1,11)):
    # w2s[di][(j,cin), (s-1)*C2 + c] = w2[cin, c, di, s-3j]  when 0 <= s-3j <= 2
    eye4 = jnp.eye(4, dtype=w1.dtype)
    w2t = jnp.transpose(w2, (2, 0, 3, 1))                    # (3, C1, 3, C2)
    w2s = (eye4[None, :, None, :, None, None] *
           w2t[:, None, :, None, :, :]).reshape(3, 4 * C1, 12 * C2)[:, :, C2:11 * C2]

    # layer 3 (block-diagonal over s', ej interleaved, cols cropped to u in [1,29)):
    # w3s[ei][(s',c), v] = w3[c, 0, ei, (v+1)-3s']  when 0 <= (v+1)-3s' <= 2
    eye10 = jnp.eye(10, dtype=w1.dtype)
    w3t = jnp.transpose(w3[:, 0, :, :], (1, 0, 2))           # (3, C2, 3)
    w3s = (eye10[None, :, None, :, None] *
           w3t[:, None, :, None, :]).reshape(3, 10 * C2, 30)[:, :, 1:29]

    return {
        "w1r": w1r, "w2s": w2s, "w3s": w3s,
        "g1": params["g1"].reshape(1, C1), "b1": params["b1"].reshape(1, C1),
        "g2": params["g2"].reshape(1, C2), "b2": params["b2"].reshape(1, C2),
    }


def _static_tables(B, C1, C2):
    """Trace-time constant tables (channel group-sums, BN2 crop mask, output gather)."""
    s1 = np.tile(np.eye(C1, dtype=np.float32), (4, 1))       # (4*C1, C1)
    s2 = np.tile(np.eye(C2, dtype=np.float32), (10, 1))      # (10*C2, C2)
    m2 = np.ones((3, 4, B, 1), np.float32)                   # rows (di, i, b)
    m2[0, 0] = 0.0                                           # full row r = 0
    m2[2, 3] = 0.0                                           # full row r = 11
    p3 = np.zeros((B * 28, 36 * B), np.float32)              # out rows (b, u)
    for b in range(B):
        for u in range(28):
            ei = (u + 1) % 3
            r = (u + 1) // 3 + 1                             # full layer-2 row
            di, i = r % 3, r // 3
            p3[b * 28 + u, ei * 12 * B + di * 4 * B + i * B + b] = 1.0
    return s1, s1.T.copy(), s2, s2.T.copy(), m2.reshape(12 * B, 1), p3


def dc_gen_t2_forward(prep, rand_vect):
    B = rand_vect.shape[0]
    R = prep["w1r"].shape[1]
    C1 = prep["w1r"].shape[2] // 4
    C2 = prep["w2s"].shape[2] // 10

    z = rand_vect.reshape(B, R)          # == .view(-1, r_size, 1, 1); free reshape

    s1, s1t, s2, s2t, m2, p3 = (jnp.asarray(a) for a in _static_tables(B, C1, C2))

    out2d = pl.pallas_call(
        _dc_gen_t2_kernel,
        grid=(1,),
        out_shape=jax.ShapeDtypeStruct((B * 28, 28), jnp.float32),
        in_specs=[
            _full((B, R)),                      # z
            _full((4, R, 4 * C1)),              # w1r
            _full((1, C1)), _full((1, C1)),     # gamma1, beta1
            _full((3, 4 * C1, 10 * C2)),        # w2s
            _full((1, C2)), _full((1, C2)),     # gamma2, beta2
            _full((3, 10 * C2, 28)),            # w3s
            _full((4 * C1, C1)),                # S1
            _full((C1, 4 * C1)),                # S1^T
            _full((10 * C2, C2)),               # S2
            _full((C2, 10 * C2)),               # S2^T
            _full((12 * B, 1)),                 # BN2 crop mask
            _full((B * 28, 36 * B)),            # final gather matrix
        ],
        out_specs=_full((B * 28, 28)),
        scratch_shapes=[
            pltpu.VMEM((4 * B, 4 * C1), jnp.float32),     # layer-1 slab
            pltpu.VMEM((12 * B, 10 * C2), jnp.float32),   # layer-2 slab
            pltpu.VMEM((36 * B, 28), jnp.float32),        # layer-3 slab
        ],
        # batch=2 with cross-batch BN statistics -> keep a single sequential
        # step; a multi-core split would have to break the BN coupling.
        compiler_params=pltpu.CompilerParams(dimension_semantics=("arbitrary",)),
    )(z, prep["w1r"], prep["g1"], prep["b1"], prep["w2s"], prep["g2"],
      prep["b2"], prep["w3s"], s1, s1t, s2, s2t, m2, p3)

    return out2d.reshape(B, 1, 28, 28)               # pure reshape, no transpose


# --------------------------- params + plain-JAX ref --------------------------

def init_params(key, r_size, in_channels=1, ngf=28, m=(1, 2, 4)):
    # m[-2::-1] == (2, 1)  ->  channels: r_size -> 56 -> 28 -> in_channels
    mult = m[-2::-1]
    c1, c2 = ngf * mult[0], ngf * mult[1]
    ks = jax.random.split(key, 7)
    s = 0.05
    return {
        "w1": s * jax.random.normal(ks[0], (r_size, c1, 4, 4), jnp.float32),
        "g1": 1.0 + s * jax.random.normal(ks[1], (c1,), jnp.float32),
        "b1": s * jax.random.normal(ks[2], (c1,), jnp.float32),
        "w2": s * jax.random.normal(ks[3], (c1, c2, 3, 3), jnp.float32),
        "g2": 1.0 + s * jax.random.normal(ks[4], (c2,), jnp.float32),
        "b2": s * jax.random.normal(ks[5], (c2,), jnp.float32),
        "w3": s * jax.random.normal(ks[6], (c2, in_channels, 3, 3), jnp.float32),
    }


def reference_forward(params, rand_vect):
    """Straightforward JAX implementation (matmul + pixel-shuffle + crop) used
    only as a numerical cross-check of the fused kernel."""
    hi = jax.lax.Precision.HIGHEST
    eps = 1e-5
    B = rand_vect.shape[0]
    R = params["w1"].shape[0]
    C1 = params["w1"].shape[1]

    def bn_relu(x, g, b):
        mean = jnp.mean(x, axis=(0, 2, 3), keepdims=True)
        var = jnp.mean((x - mean) ** 2, axis=(0, 2, 3), keepdims=True)
        xn = (x - mean) * jax.lax.rsqrt(var + eps)
        return jnp.maximum(xn * g.reshape(1, -1, 1, 1) + b.reshape(1, -1, 1, 1), 0.0)

    def convt_s3k3p1(x, w):
        Bb, Cin, H, W = x.shape
        Cout = w.shape[1]
        xr = jnp.transpose(x, (0, 2, 3, 1)).reshape(Bb * H * W, Cin)
        y = jnp.dot(xr, w.reshape(Cin, Cout * 9), precision=hi)
        y = y.reshape(Bb, H, W, Cout, 3, 3)
        full = jnp.transpose(y, (0, 3, 1, 4, 2, 5)).reshape(Bb, Cout, 3 * H, 3 * W)
        return full[:, :, 1:3 * H - 1, 1:3 * W - 1]

    z = rand_vect.reshape(B, R)
    h = jnp.dot(z, params["w1"].reshape(R, C1 * 16), precision=hi).reshape(B, C1, 4, 4)
    h = bn_relu(h, params["g1"], params["b1"])
    h = convt_s3k3p1(h, params["w2"])
    h = bn_relu(h, params["g2"], params["b2"])
    h = convt_s3k3p1(h, params["w3"])
    return jnp.tanh(h)


# ---------------------------------- main ------------------------------------

if __name__ == "__main__":
    r_size = 16
    batch = 2

    key = jax.random.PRNGKey(0)
    kp, kx = jax.random.split(key)
    params = init_params(kp, r_size)
    rand_vect = jax.random.normal(kx, (batch, r_size, 1, 1), jnp.float32)

    prep = prepare_params(params)          # one-time weight re-layout, outside jit
    fwd = jax.jit(dc_gen_t2_forward)
    out = fwd(prep, rand_vect)
    jax.block_until_ready(out)

    assert out.shape == (batch, 1, 28, 28), out.shape
    assert bool(jnp.all(jnp.isfinite(out)))
    assert bool(jnp.all(jnp.abs(out) <= 1.0))      # tanh range

    ref = jax.jit(reference_forward)(params, rand_vect)
    max_err = float(jnp.max(jnp.abs(out - ref)))
    assert bool(jnp.allclose(out, ref, atol=5e-3)), max_err

    print("KERNEL_OK")
</pallas_src>

<mosaic_0001>
module attributes {stable_mosaic.version = 11 : i64} {
  func.func @_dc_gen_t2_kernel(%arg0: i32, %arg1: memref<2x16xf32, #tpu.memory_space<vmem>>, %arg2: memref<4x16x224xf32, #tpu.memory_space<vmem>>, %arg3: memref<1x56xf32, #tpu.memory_space<vmem>>, %arg4: memref<1x56xf32, #tpu.memory_space<vmem>>, %arg5: memref<3x224x280xf32, #tpu.memory_space<vmem>>, %arg6: memref<1x28xf32, #tpu.memory_space<vmem>>, %arg7: memref<1x28xf32, #tpu.memory_space<vmem>>, %arg8: memref<3x280x28xf32, #tpu.memory_space<vmem>>, %arg9: memref<224x56xf32, #tpu.memory_space<vmem>>, %arg10: memref<56x224xf32, #tpu.memory_space<vmem>>, %arg11: memref<280x28xf32, #tpu.memory_space<vmem>>, %arg12: memref<28x280xf32, #tpu.memory_space<vmem>>, %arg13: memref<24x1xf32, #tpu.memory_space<vmem>>, %arg14: memref<56x72xf32, #tpu.memory_space<vmem>>, %arg15: memref<56x28xf32, #tpu.memory_space<vmem>>, %arg16: memref<8x224xf32, #tpu.memory_space<vmem>>, %arg17: memref<24x280xf32, #tpu.memory_space<vmem>>, %arg18: memref<72x28xf32, #tpu.memory_space<vmem>>) attributes {dimension_semantics = [#tpu.dimension_semantics<arbitrary>], iteration_bounds = array<i64: 1>, scalar_prefetch = 0 : i64, scratch_operands = 3 : i64, tpu.core_type = #tpu.core_type<tc>, window_params = [{pipeline_mode = #tpu.pipeline_mode<synchronous>, transform_indices = @transform_0, window_bounds = array<i64: 2, 16>}, {pipeline_mode = #tpu.pipeline_mode<synchronous>, transform_indices = @transform_1, window_bounds = array<i64: 4, 16, 224>}, {pipeline_mode = #tpu.pipeline_mode<synchronous>, transform_indices = @transform_2, window_bounds = array<i64: 1, 56>}, {pipeline_mode = #tpu.pipeline_mode<synchronous>, transform_indices = @transform_3, window_bounds = array<i64: 1, 56>}, {pipeline_mode = #tpu.pipeline_mode<synchronous>, transform_indices = @transform_4, window_bounds = array<i64: 3, 224, 280>}, {pipeline_mode = #tpu.pipeline_mode<synchronous>, transform_indices = @transform_5, window_bounds = array<i64: 1, 28>}, {pipeline_mode = #tpu.pipeline_mode<synchronous>, transform_indices = @transform_6, window_bounds = array<i64: 1, 28>}, {pipeline_mode = #tpu.pipeline_mode<synchronous>, transform_indices = @transform_7, window_bounds = array<i64: 3, 280, 28>}, {pipeline_mode = #tpu.pipeline_mode<synchronous>, transform_indices = @transform_8, window_bounds = array<i64: 224, 56>}, {pipeline_mode = #tpu.pipeline_mode<synchronous>, transform_indices = @transform_9, window_bounds = array<i64: 56, 224>}, {pipeline_mode = #tpu.pipeline_mode<synchronous>, transform_indices = @transform_10, window_bounds = array<i64: 280, 28>}, {pipeline_mode = #tpu.pipeline_mode<synchronous>, transform_indices = @transform_11, window_bounds = array<i64: 28, 280>}, {pipeline_mode = #tpu.pipeline_mode<synchronous>, transform_indices = @transform_12, window_bounds = array<i64: 24, 1>}, {pipeline_mode = #tpu.pipeline_mode<synchronous>, transform_indices = @transform_13, window_bounds = array<i64: 56, 72>}, {pipeline_mode = #tpu.pipeline_mode<synchronous>, transform_indices = @transform_14, window_bounds = array<i64: 56, 28>}]} {
    %c0 = arith.constant 0 : index
    %c0_0 = arith.constant 0 : index
    %0 = vector.load %arg1[%c0, %c0_0] : memref<2x16xf32, #tpu.memory_space<vmem>>, vector<2x16xf32>
    %c0_1 = arith.constant 0 : index
    %c0_2 = arith.constant 0 : index
    %c0_3 = arith.constant 0 : index
    %1 = vector.load %arg2[%c0_1, %c0_2, %c0_3] : memref<4x16x224xf32, #tpu.memory_space<vmem>>, vector<1x16x224xf32>
    %2 = vector.shape_cast %1 : vector<1x16x224xf32> to vector<16x224xf32>
    %cst = arith.constant dense<0.000000e+00> : vector<2x224xf32>
    %3 = tpu.matmul %0, %2, %cst {dimension_numbers = #tpu.dot_dimension_numbers<[1], [0], [0], [1], [0, 0, 1, 1], [], []>} : vector<2x16xf32>, vector<16x224xf32>, vector<2x224xf32> -> vector<2x224xf32>
    %c0_4 = arith.constant 0 : index
    %c0_5 = arith.constant 0 : index
    %4 = vector.load %arg16[%c0_4, %c0_5] : memref<8x224xf32, #tpu.memory_space<vmem>>, vector<2x224xf32>
    tpu.vector_store %arg16[%c0_4, %c0_5], %3 {strides = array<i32>} : memref<8x224xf32, #tpu.memory_space<vmem>>, vector<2x224xf32>,
    %c1 = arith.constant 1 : index
    %c0_6 = arith.constant 0 : index
    %c0_7 = arith.constant 0 : index
    %5 = vector.load %arg2[%c1, %c0_6, %c0_7] : memref<4x16x224xf32, #tpu.memory_space<vmem>>, vector<1x16x224xf32>
    %6 = vector.shape_cast %5 : vector<1x16x224xf32> to vector<16x224xf32>
    %cst_8 = arith.constant dense<0.000000e+00> : vector<2x224xf32>
    %7 = tpu.matmul %0, %6, %cst_8 {dimension_numbers = #tpu.dot_dimension_numbers<[1], [0], [0], [1], [0, 0, 1, 1], [], []>} : vector<2x16xf32>, vector<16x224xf32>, vector<2x224xf32> -> vector<2x224xf32>
    %c2 = arith.constant 2 : index
    %c0_9 = arith.constant 0 : index
    %8 = vector.load %arg16[%c2, %c0_9] : memref<8x224xf32, #tpu.memory_space<vmem>>, vector<2x224xf32>
    tpu.vector_store %arg16[%c2, %c0_9], %7 {strides = array<i32>} : memref<8x224xf32, #tpu.memory_space<vmem>>, vector<2x224xf32>,
    %c2_10 = arith.constant 2 : index
    %c0_11 = arith.constant 0 : index
    %c0_12 = arith.constant 0 : index
    %9 = vector.load %arg2[%c2_10, %c0_11, %c0_12] : memref<4x16x224xf32, #tpu.memory_space<vmem>>, vector<1x16x224xf32>
    %10 = vector.shape_cast %9 : vector<1x16x224xf32> to vector<16x224xf32>
    %cst_13 = arith.constant dense<0.000000e+00> : vector<2x224xf32>
    %11 = tpu.matmul %0, %10, %cst_13 {dimension_numbers = #tpu.dot_dimension_numbers<[1], [0], [0], [1], [0, 0, 1, 1], [], []>} : vector<2x16xf32>, vector<16x224xf32>, vector<2x224xf32> -> vector<2x224xf32>
    %c4 = arith.constant 4 : index
    %c0_14 = arith.constant 0 : index
    %12 = vector.load %arg16[%c4, %c0_14] : memref<8x224xf32, #tpu.memory_space<vmem>>, vector<2x224xf32>
    tpu.vector_store %arg16[%c4, %c0_14], %11 {strides = array<i32>} : memref<8x224xf32, #tpu.memory_space<vmem>>, vector<2x224xf32>,
    %c3 = arith.constant 3 : index
    %c0_15 = arith.constant 0 : index
    %c0_16 = arith.constant 0 : index
    %13 = vector.load %arg2[%c3, %c0_15, %c0_16] : memref<4x16x224xf32, #tpu.memory_space<vmem>>, vector<1x16x224xf32>
    %14 = vector.shape_cast %13 : vector<1x16x224xf32> to vector<16x224xf32>
    %cst_17 = arith.constant dense<0.000000e+00> : vector<2x224xf32>
    %15 = tpu.matmul %0, %14, %cst_17 {dimension_numbers = #tpu.dot_dimension_numbers<[1], [0], [0], [1], [0, 0, 1, 1], [], []>} : vector<2x16xf32>, vector<16x224xf32>, vector<2x224xf32> -> vector<2x224xf32>
    %c6 = arith.constant 6 : index
    %c0_18 = arith.constant 0 : index
    %16 = vector.load %arg16[%c6, %c0_18] : memref<8x224xf32, #tpu.memory_space<vmem>>, vector<2x224xf32>
    tpu.vector_store %arg16[%c6, %c0_18], %15 {strides = array<i32>} : memref<8x224xf32, #tpu.memory_space<vmem>>, vector<2x224xf32>,
    %c0_19 = arith.constant 0 : index
    %c0_20 = arith.constant 0 : index
    %17 = vector.load %arg16[%c0_19, %c0_20] : memref<8x224xf32, #tpu.memory_space<vmem>>, vector<8x224xf32>
    %c0_21 = arith.constant 0 : index
    %c0_22 = arith.constant 0 : index
    %18 = vector.load %arg9[%c0_21, %c0_22] : memref<224x56xf32, #tpu.memory_space<vmem>>, vector<224x56xf32>
    %c0_23 = arith.constant 0 : index
    %c0_24 = arith.constant 0 : index
    %19 = vector.load %arg10[%c0_23, %c0_24] : memref<56x224xf32, #tpu.memory_space<vmem>>, vector<56x224xf32>
    %cst_25 = arith.constant dense<0.000000e+00> : vector<224xf32>
    %20 = vector.multi_reduction <add>, %17, %cst_25 [0] : vector<8x224xf32> to vector<224xf32>
    %21 = vector.shape_cast %20 : vector<224xf32> to vector<1x224xf32>
    %cst_26 = arith.constant dense<0.000000e+00> : vector<1x56xf32>
    %22 = tpu.matmul %21, %18, %cst_26 {dimension_numbers = #tpu.dot_dimension_numbers<[1], [0], [0], [1], [0, 0, 1, 1], [], []>} : vector<1x224xf32>, vector<224x56xf32>, vector<1x56xf32> -> vector<1x56xf32>
    %cst_27 = arith.constant 3.200000e+01 : f32
    %23 = vector.broadcast %cst_27 : f32 to vector<1x56xf32>
    %24 = arith.divf %22, %23 : vector<1x56xf32>
    %cst_28 = arith.constant dense<0.000000e+00> : vector<1x224xf32>
    %25 = tpu.matmul %24, %19, %cst_28 {dimension_numbers = #tpu.dot_dimension_numbers<[1], [0], [0], [1], [0, 0, 1, 1], [], []>} : vector<1x56xf32>, vector<56x224xf32>, vector<1x224xf32> -> vector<1x224xf32>
    %26 = vector.broadcast %25 : vector<1x224xf32> to vector<8x224xf32>
    %27 = arith.subf %17, %26 : vector<8x224xf32>
    %28 = arith.mulf %27, %27 : vector<8x224xf32>
    %cst_29 = arith.constant dense<0.000000e+00> : vector<224xf32>
    %29 = vector.multi_reduction <add>, %28, %cst_29 [0] : vector<8x224xf32> to vector<224xf32>
    %30 = vector.shape_cast %29 : vector<224xf32> to vector<1x224xf32>
    %cst_30 = arith.constant dense<0.000000e+00> : vector<1x56xf32>
    %31 = tpu.matmul %30, %18, %cst_30 {dimension_numbers = #tpu.dot_dimension_numbers<[1], [0], [0], [1], [0, 0, 1, 1], [], []>} : vector<1x224xf32>, vector<224x56xf32>, vector<1x56xf32> -> vector<1x56xf32>
    %cst_31 = arith.constant 3.200000e+01 : f32
    %32 = vector.broadcast %cst_31 : f32 to vector<1x56xf32>
    %33 = arith.divf %31, %32 : vector<1x56xf32>
    %c0_32 = arith.constant 0 : index
    %c0_33 = arith.constant 0 : index
    %34 = vector.load %arg3[%c0_32, %c0_33] : memref<1x56xf32, #tpu.memory_space<vmem>>, vector<1x56xf32>
    %cst_34 = arith.constant 9.99999974E-6 : f32
    %35 = vector.broadcast %cst_34 : f32 to vector<1x56xf32>
    %36 = arith.addf %33, %35 : vector<1x56xf32>
    %37 = math.rsqrt %36 : vector<1x56xf32>
    %38 = arith.mulf %34, %37 : vector<1x56xf32>
    %c0_35 = arith.constant 0 : index
    %c0_36 = arith.constant 0 : index
    %39 = vector.load %arg4[%c0_35, %c0_36] : memref<1x56xf32, #tpu.memory_space<vmem>>, vector<1x56xf32>
    %40 = arith.mulf %24, %38 : vector<1x56xf32>
    %41 = arith.subf %39, %40 : vector<1x56xf32>
    %cst_37 = arith.constant dense<0.000000e+00> : vector<1x224xf32>
    %42 = tpu.matmul %38, %19, %cst_37 {dimension_numbers = #tpu.dot_dimension_numbers<[1], [0], [0], [1], [0, 0, 1, 1], [], []>} : vector<1x56xf32>, vector<56x224xf32>, vector<1x224xf32> -> vector<1x224xf32>
    %43 = vector.broadcast %42 : vector<1x224xf32> to vector<8x224xf32>
    %44 = arith.mulf %17, %43 : vector<8x224xf32>
    %cst_38 = arith.constant dense<0.000000e+00> : vector<1x224xf32>
    %45 = tpu.matmul %41, %19, %cst_38 {dimension_numbers = #tpu.dot_dimension_numbers<[1], [0], [0], [1], [0, 0, 1, 1], [], []>} : vector<1x56xf32>, vector<56x224xf32>, vector<1x224xf32> -> vector<1x224xf32>
    %46 = vector.broadcast %45 : vector<1x224xf32> to vector<8x224xf32>
    %47 = arith.addf %44, %46 : vector<8x224xf32>
    %cst_39 = arith.constant 0.000000e+00 : f32
    %48 = vector.broadcast %cst_39 : f32 to vector<8x224xf32>
    %49 = arith.maximumf %47, %48 : vector<8x224xf32>
    %c0_40 = arith.constant 0 : index
    %c0_41 = arith.constant 0 : index
    %c0_42 = arith.constant 0 : index
    %50 = vector.load %arg5[%c0_40, %c0_41, %c0_42] : memref<3x224x280xf32, #tpu.memory_space<vmem>>, vector<1x224x280xf32>
    %51 = vector.shape_cast %50 : vector<1x224x280xf32> to vector<224x280xf32>
    %cst_43 = arith.constant dense<0.000000e+00> : vector<8x280xf32>
    %52 = tpu.matmul %49, %51, %cst_43 {dimension_numbers = #tpu.dot_dimension_numbers<[1], [0], [0], [1], [0, 0, 1, 1], [], []>} : vector<8x224xf32>, vector<224x280xf32>, vector<8x280xf32> -> vector<8x280xf32>
    %c0_44 = arith.constant 0 : index
    %c0_45 = arith.constant 0 : index
    %53 = vector.load %arg17[%c0_44, %c0_45] : memref<24x280xf32, #tpu.memory_space<vmem>>, vector<8x280xf32>
    tpu.vector_store %arg17[%c0_44, %c0_45], %52 {strides = array<i32>} : memref<24x280xf32, #tpu.memory_space<vmem>>, vector<8x280xf32>,
    %c1_46 = arith.constant 1 : index
    %c0_47 = arith.constant 0 : index
    %c0_48 = arith.constant 0 : index
    %54 = vector.load %arg5[%c1_46, %c0_47, %c0_48] : memref<3x224x280xf32, #tpu.memory_space<vmem>>, vector<1x224x280xf32>
    %55 = vector.shape_cast %54 : vector<1x224x280xf32> to vector<224x280xf32>
    %cst_49 = arith.constant dense<0.000000e+00> : vector<8x280xf32>
    %56 = tpu.matmul %49, %55, %cst_49 {dimension_numbers = #tpu.dot_dimension_numbers<[1], [0], [0], [1], [0, 0, 1, 1], [], []>} : vector<8x224xf32>, vector<224x280xf32>, vector<8x280xf32> -> vector<8x280xf32>
    %c8 = arith.constant 8 : index
    %c0_50 = arith.constant 0 : index
    %57 = vector.load %arg17[%c8, %c0_50] : memref<24x280xf32, #tpu.memory_space<vmem>>, vector<8x280xf32>
    tpu.vector_store %arg17[%c8, %c0_50], %56 {strides = array<i32>} : memref<24x280xf32, #tpu.memory_space<vmem>>, vector<8x280xf32>,
    %c2_51 = arith.constant 2 : index
    %c0_52 = arith.constant 0 : index
    %c0_53 = arith.constant 0 : index
    %58 = vector.load %arg5[%c2_51, %c0_52, %c0_53] : memref<3x224x280xf32, #tpu.memory_space<vmem>>, vector<1x224x280xf32>
    %59 = vector.shape_cast %58 : vector<1x224x280xf32> to vector<224x280xf32>
    %cst_54 = arith.constant dense<0.000000e+00> : vector<8x280xf32>
    %60 = tpu.matmul %49, %59, %cst_54 {dimension_numbers = #tpu.dot_dimension_numbers<[1], [0], [0], [1], [0, 0, 1, 1], [], []>} : vector<8x224xf32>, vector<224x280xf32>, vector<8x280xf32> -> vector<8x280xf32>
    %c16 = arith.constant 16 : index
    %c0_55 = arith.constant 0 : index
    %61 = vector.load %arg17[%c16, %c0_55] : memref<24x280xf32, #tpu.memory_space<vmem>>, vector<8x280xf32>
    tpu.vector_store %arg17[%c16, %c0_55], %60 {strides = array<i32>} : memref<24x280xf32, #tpu.memory_space<vmem>>, vector<8x280xf32>,
    %c0_56 = arith.constant 0 : index
    %c0_57 = arith.constant 0 : index
    %62 = vector.load %arg17[%c0_56, %c0_57] : memref<24x280xf32, #tpu.memory_space<vmem>>, vector<24x280xf32>
    %c0_58 = arith.constant 0 : index
    %c0_59 = arith.constant 0 : index
    %63 = vector.load %arg13[%c0_58, %c0_59] : memref<24x1xf32, #tpu.memory_space<vmem>>, vector<24x1xf32>
    %c0_60 = arith.constant 0 : index
    %c0_61 = arith.constant 0 : index
    %64 = vector.load %arg11[%c0_60, %c0_61] : memref<280x28xf32, #tpu.memory_space<vmem>>, vector<280x28xf32>
    %c0_62 = arith.constant 0 : index
    %c0_63 = arith.constant 0 : index
    %65 = vector.load %arg12[%c0_62, %c0_63] : memref<28x280xf32, #tpu.memory_space<vmem>>, vector<28x280xf32>
    %66 = vector.broadcast %63 : vector<24x1xf32> to vector<24x280xf32>
    %67 = arith.mulf %62, %66 : vector<24x280xf32>
    %cst_64 = arith.constant dense<0.000000e+00> : vector<280xf32>
    %68 = vector.multi_reduction <add>, %67, %cst_64 [0] : vector<24x280xf32> to vector<280xf32>
    %69 = vector.shape_cast %68 : vector<280xf32> to vector<1x280xf32>
    %cst_65 = arith.constant dense<0.000000e+00> : vector<1x28xf32>
    %70 = tpu.matmul %69, %64, %cst_65 {dimension_numbers = #tpu.dot_dimension_numbers<[1], [0], [0], [1], [0, 0, 1, 1], [], []>} : vector<1x280xf32>, vector<280x28xf32>, vector<1x28xf32> -> vector<1x28xf32>
    %cst_66 = arith.constant 2.000000e+02 : f32
    %71 = vector.broadcast %cst_66 : f32 to vector<1x28xf32>
    %72 = arith.divf %70, %71 : vector<1x28xf32>
    %cst_67 = arith.constant dense<0.000000e+00> : vector<1x280xf32>
    %73 = tpu.matmul %72, %65, %cst_67 {dimension_numbers = #tpu.dot_dimension_numbers<[1], [0], [0], [1], [0, 0, 1, 1], [], []>} : vector<1x28xf32>, vector<28x280xf32>, vector<1x280xf32> -> vector<1x280xf32>
    %74 = vector.broadcast %73 : vector<1x280xf32> to vector<24x280xf32>
    %75 = arith.subf %62, %74 : vector<24x280xf32>
    %76 = vector.broadcast %63 : vector<24x1xf32> to vector<24x280xf32>
    %77 = arith.mulf %75, %76 : vector<24x280xf32>
    %78 = arith.mulf %77, %77 : vector<24x280xf32>
    %cst_68 = arith.constant dense<0.000000e+00> : vector<280xf32>
    %79 = vector.multi_reduction <add>, %78, %cst_68 [0] : vector<24x280xf32> to vector<280xf32>
    %80 = vector.shape_cast %79 : vector<280xf32> to vector<1x280xf32>
    %cst_69 = arith.constant dense<0.000000e+00> : vector<1x28xf32>
    %81 = tpu.matmul %80, %64, %cst_69 {dimension_numbers = #tpu.dot_dimension_numbers<[1], [0], [0], [1], [0, 0, 1, 1], [], []>} : vector<1x280xf32>, vector<280x28xf32>, vector<1x28xf32> -> vector<1x28xf32>
    %cst_70 = arith.constant 2.000000e+02 : f32
    %82 = vector.broadcast %cst_70 : f32 to vector<1x28xf32>
    %83 = arith.divf %81, %82 : vector<1x28xf32>
    %c0_71 = arith.constant 0 : index
    %c0_72 = arith.constant 0 : index
    %84 = vector.load %arg6[%c0_71, %c0_72] : memref<1x28xf32, #tpu.memory_space<vmem>>, vector<1x28xf32>
    %cst_73 = arith.constant 9.99999974E-6 : f32
    %85 = vector.broadcast %cst_73 : f32 to vector<1x28xf32>
    %86 = arith.addf %83, %85 : vector<1x28xf32>
    %87 = math.rsqrt %86 : vector<1x28xf32>
    %88 = arith.mulf %84, %87 : vector<1x28xf32>
    %c0_74 = arith.constant 0 : index
    %c0_75 = arith.constant 0 : index
    %89 = vector.load %arg7[%c0_74, %c0_75] : memref<1x28xf32, #tpu.memory_space<vmem>>, vector<1x28xf32>
    %90 = arith.mulf %72, %88 : vector<1x28xf32>
    %91 = arith.subf %89, %90 : vector<1x28xf32>
    %cst_76 = arith.constant dense<0.000000e+00> : vector<1x280xf32>
    %92 = tpu.matmul %88, %65, %cst_76 {dimension_numbers = #tpu.dot_dimension_numbers<[1], [0], [0], [1], [0, 0, 1, 1], [], []>} : vector<1x28xf32>, vector<28x280xf32>, vector<1x280xf32> -> vector<1x280xf32>
    %93 = vector.broadcast %92 : vector<1x280xf32> to vector<24x280xf32>
    %94 = arith.mulf %62, %93 : vector<24x280xf32>
    %cst_77 = arith.constant dense<0.000000e+00> : vector<1x280xf32>
    %95 = tpu.matmul %91, %65, %cst_77 {dimension_numbers = #tpu.dot_dimension_numbers<[1], [0], [0], [1], [0, 0, 1, 1], [], []>} : vector<1x28xf32>, vector<28x280xf32>, vector<1x280xf32> -> vector<1x280xf32>
    %96 = vector.broadcast %95 : vector<1x280xf32> to vector<24x280xf32>
    %97 = arith.addf %94, %96 : vector<24x280xf32>
    %cst_78 = arith.constant 0.000000e+00 : f32
    %98 = vector.broadcast %cst_78 : f32 to vector<24x280xf32>
    %99 = arith.maximumf %97, %98 : vector<24x280xf32>
    %c0_79 = arith.constant 0 : index
    %c0_80 = arith.constant 0 : index
    %c0_81 = arith.constant 0 : index
    %100 = vector.load %arg8[%c0_79, %c0_80, %c0_81] : memref<3x280x28xf32, #tpu.memory_space<vmem>>, vector<1x280x28xf32>
    %101 = vector.shape_cast %100 : vector<1x280x28xf32> to vector<280x28xf32>
    %cst_82 = arith.constant dense<0.000000e+00> : vector<24x28xf32>
    %102 = tpu.matmul %99, %101, %cst_82 {dimension_numbers = #tpu.dot_dimension_numbers<[1], [0], [0], [1], [0, 0, 1, 1], [], []>} : vector<24x280xf32>, vector<280x28xf32>, vector<24x28xf32> -> vector<24x28xf32>
    %c0_83 = arith.constant 0 : index
    %c0_84 = arith.constant 0 : index
    %103 = vector.load %arg18[%c0_83, %c0_84] : memref<72x28xf32, #tpu.memory_space<vmem>>, vector<24x28xf32>
    tpu.vector_store %arg18[%c0_83, %c0_84], %102 {strides = array<i32>} : memref<72x28xf32, #tpu.memory_space<vmem>>, vector<24x28xf32>,
    %c1_85 = arith.constant 1 : index
    %c0_86 = arith.constant 0 : index
    %c0_87 = arith.constant 0 : index
    %104 = vector.load %arg8[%c1_85, %c0_86, %c0_87] : memref<3x280x28xf32, #tpu.memory_space<vmem>>, vector<1x280x28xf32>
    %105 = vector.shape_cast %104 : vector<1x280x28xf32> to vector<280x28xf32>
    %cst_88 = arith.constant dense<0.000000e+00> : vector<24x28xf32>
    %106 = tpu.matmul %99, %105, %cst_88 {dimension_numbers = #tpu.dot_dimension_numbers<[1], [0], [0], [1], [0, 0, 1, 1], [], []>} : vector<24x280xf32>, vector<280x28xf32>, vector<24x28xf32> -> vector<24x28xf32>
    %c24 = arith.constant 24 : index
    %c0_89 = arith.constant 0 : index
    %107 = vector.load %arg18[%c24, %c0_89] : memref<72x28xf32, #tpu.memory_space<vmem>>, vector<24x28xf32>
    tpu.vector_store %arg18[%c24, %c0_89], %106 {strides = array<i32>} : memref<72x28xf32, #tpu.memory_space<vmem>>, vector<24x28xf32>,
    %c2_90 = arith.constant 2 : index
    %c0_91 = arith.constant 0 : index
    %c0_92 = arith.constant 0 : index
    %108 = vector.load %arg8[%c2_90, %c0_91, %c0_92] : memref<3x280x28xf32, #tpu.memory_space<vmem>>, vector<1x280x28xf32>
    %109 = vector.shape_cast %108 : vector<1x280x28xf32> to vector<280x28xf32>
    %cst_93 = arith.constant dense<0.000000e+00> : vector<24x28xf32>
    %110 = tpu.matmul %99, %109, %cst_93 {dimension_numbers = #tpu.dot_dimension_numbers<[1], [0], [0], [1], [0, 0, 1, 1], [], []>} : vector<24x280xf32>, vector<280x28xf32>, vector<24x28xf32> -> vector<24x28xf32>
    %c48 = arith.constant 48 : index
    %c0_94 = arith.constant 0 : index
    %111 = vector.load %arg18[%c48, %c0_94] : memref<72x28xf32, #tpu.memory_space<vmem>>, vector<24x28xf32>
    tpu.vector_store %arg18[%c48, %c0_94], %110 {strides = array<i32>} : memref<72x28xf32, #tpu.memory_space<vmem>>, vector<24x28xf32>,
    %c0_95 = arith.constant 0 : index
    %c0_96 = arith.constant 0 : index
    %112 = vector.load %arg14[%c0_95, %c0_96] : memref<56x72xf32, #tpu.memory_space<vmem>>, vector<56x72xf32>
    %c0_97 = arith.constant 0 : index
    %c0_98 = arith.constant 0 : index
    %113 = vector.load %arg18[%c0_97, %c0_98] : memref<72x28xf32, #tpu.memory_space<vmem>>, vector<72x28xf32>
    %cst_99 = arith.constant dense<0.000000e+00> : vector<56x28xf32>
    %114 = tpu.matmul %112, %113, %cst_99 {dimension_numbers = #tpu.dot_dimension_numbers<[1], [0], [0], [1], [0, 0, 1, 1], [], []>} : vector<56x72xf32>, vector<72x28xf32>, vector<56x28xf32> -> vector<56x28xf32>
    %115 = math.tanh %114 : vector<56x28xf32>
    %c0_100 = arith.constant 0 : index
    %c0_101 = arith.constant 0 : index
    %116 = vector.load %arg15[%c0_100, %c0_101] : memref<56x28xf32, #tpu.memory_space<vmem>>, vector<56x28xf32>
    tpu.vector_store %arg15[%c0_100, %c0_101], %115 {strides = array<i32>} : memref<56x28xf32, #tpu.memory_space<vmem>>, vector<56x28xf32>,
    return
  }
  func.func @transform_0(%arg0: i32) -> (i32, i32) {
    %c0_i32 = arith.constant 0 : i32
    %c0_i32_0 = arith.constant 0 : i32
    %c0_i32_1 = arith.constant 0 : i32
    return %c0_i32, %c0_i32_0 : i32, i32
  }
  func.func @transform_1(%arg0: i32) -> (i32, i32, i32) {
    %c0_i32 = arith.constant 0 : i32
    %c0_i32_0 = arith.constant 0 : i32
    %c0_i32_1 = arith.constant 0 : i32
    %c0_i32_2 = arith.constant 0 : i32
    return %c0_i32, %c0_i32_0, %c0_i32_1 : i32, i32, i32
  }
  func.func @transform_2(%arg0: i32) -> (i32, i32) {
    %c0_i32 = arith.constant 0 : i32
    %c0_i32_0 = arith.constant 0 : i32
    %c0_i32_1 = arith.constant 0 : i32
    return %c0_i32, %c0_i32_0 : i32, i32
  }
  func.func @transform_3(%arg0: i32) -> (i32, i32) {
    %c0_i32 = arith.constant 0 : i32
    %c0_i32_0 = arith.constant 0 : i32
    %c0_i32_1 = arith.constant 0 : i32
    return %c0_i32, %c0_i32_0 : i32, i32
  }
  func.func @transform_4(%arg0: i32) -> (i32, i32, i32) {
    %c0_i32 = arith.constant 0 : i32
    %c0_i32_0 = arith.constant 0 : i32
    %c0_i32_1 = arith.constant 0 : i32
    %c0_i32_2 = arith.constant 0 : i32
    return %c0_i32, %c0_i32_0, %c0_i32_1 : i32, i32, i32
  }
  func.func @transform_5(%arg0: i32) -> (i32, i32) {
    %c0_i32 = arith.constant 0 : i32
    %c0_i32_0 = arith.constant 0 : i32
    %c0_i32_1 = arith.constant 0 : i32
    return %c0_i32, %c0_i32_0 : i32, i32
  }
  func.func @transform_6(%arg0: i32) -> (i32, i32) {
    %c0_i32 = arith.constant 0 : i32
    %c0_i32_0 = arith.constant 0 : i32
    %c0_i32_1 = arith.constant 0 : i32
    return %c0_i32, %c0_i32_0 : i32, i32
  }
  func.func @transform_7(%arg0: i32) -> (i32, i32, i32) {
    %c0_i32 = arith.constant 0 : i32
    %c0_i32_0 = arith.constant 0 : i32
    %c0_i32_1 = arith.constant 0 : i32
    %c0_i32_2 = arith.constant 0 : i32
    return %c0_i32, %c0_i32_0, %c0_i32_1 : i32, i32, i32
  }
  func.func @transform_8(%arg0: i32) -> (i32, i32) {
    %c0_i32 = arith.constant 0 : i32
    %c0_i32_0 = arith.constant 0 : i32
    %c0_i32_1 = arith.constant 0 : i32
    return %c0_i32, %c0_i32_0 : i32, i32
  }
  func.func @transform_9(%arg0: i32) -> (i32, i32) {
    %c0_i32 = arith.constant 0 : i32
    %c0_i32_0 = arith.constant 0 : i32
    %c0_i32_1 = arith.constant 0 : i32
    return %c0_i32, %c0_i32_0 : i32, i32
  }
  func.func @transform_10(%arg0: i32) -> (i32, i32) {
    %c0_i32 = arith.constant 0 : i32
    %c0_i32_0 = arith.constant 0 : i32
    %c0_i32_1 = arith.constant 0 : i32
    return %c0_i32, %c0_i32_0 : i32, i32
  }
  func.func @transform_11(%arg0: i32) -> (i32, i32) {
    %c0_i32 = arith.constant 0 : i32
    %c0_i32_0 = arith.constant 0 : i32
    %c0_i32_1 = arith.constant 0 : i32
    return %c0_i32, %c0_i32_0 : i32, i32
  }
  func.func @transform_12(%arg0: i32) -> (i32, i32) {
    %c0_i32 = arith.constant 0 : i32
    %c0_i32_0 = arith.constant 0 : i32
    %c0_i32_1 = arith.constant 0 : i32
    return %c0_i32, %c0_i32_0 : i32, i32
  }
  func.func @transform_13(%arg0: i32) -> (i32, i32) {
    %c0_i32 = arith.constant 0 : i32
    %c0_i32_0 = arith.constant 0 : i32
    %c0_i32_1 = arith.constant 0 : i32
    return %c0_i32, %c0_i32_0 : i32, i32
  }
  func.func @transform_14(%arg0: i32) -> (i32, i32) {
    %c0_i32 = arith.constant 0 : i32
    %c0_i32_0 = arith.constant 0 : i32
    %c0_i32_1 = arith.constant 0 : i32
    return %c0_i32, %c0_i32_0 : i32, i32
  }
}

</mosaic_0001>

<llo_original>
// kernel: dc_gen_t2_forward.1
$region0: #{dc_gen_t2_forward.1}
  #allocation0 [shape = 'u32[]', space=smem, size = 0x4, offset = 0x4, fixed_abs, tag = 'smem constant byte address 0x4 - core index']
  #allocation1 [shape = 'u32[72,128]{1,0:T(1,128)}', space=vmem, size = 0x9000, scoped, tag = 'internal scratch']
  #allocation2 [shape = 'f32[8,224]{1,0:T(8,128)}', space=vmem, size = 0x2000, scoped, tag = 'scratch operand']
  #allocation3 [shape = 'f32[24,280]{1,0:T(8,128)}', space=vmem, size = 0x9000, scoped, tag = 'scratch operand']
  #allocation4 [shape = 'f32[72,28]{1,0:T(8,128)}', space=vmem, size = 0x9000, scoped, tag = 'scratch operand']
  %s0 = inlined_call_operand.vmem [shape: f32[2,16], index: 0, kind: input, shape index: {}]
  %s1 = inlined_call_operand.vmem [shape: f32[4,16,224], index: 1, kind: input, shape index: {}]
  %s2 = inlined_call_operand.vmem [shape: f32[1,56], index: 2, kind: input, shape index: {}]
  %s3 = inlined_call_operand.vmem [shape: f32[1,56], index: 3, kind: input, shape index: {}]
  %s4 = inlined_call_operand.vmem [shape: f32[3,224,280], index: 4, kind: input, shape index: {}]
  %s5 = inlined_call_operand.vmem [shape: f32[1,28], index: 5, kind: input, shape index: {}]
  %s6 = inlined_call_operand.vmem [shape: f32[1,28], index: 6, kind: input, shape index: {}]
  %s7 = inlined_call_operand.vmem [shape: f32[3,280,28], index: 7, kind: input, shape index: {}]
  %s8 = inlined_call_operand.vmem [shape: f32[224,56], index: 8, kind: input, shape index: {}]
  %s9 = inlined_call_operand.vmem [shape: f32[56,224], index: 9, kind: input, shape index: {}]
  %s10 = inlined_call_operand.vmem [shape: f32[280,28], index: 10, kind: input, shape index: {}]
  %s11 = inlined_call_operand.vmem [shape: f32[28,280], index: 11, kind: input, shape index: {}]
  %s12 = inlined_call_operand.vmem [shape: f32[24,1], index: 12, kind: input, shape index: {}]
  %s13 = inlined_call_operand.vmem [shape: f32[56,72], index: 13, kind: input, shape index: {}]
  %s14 = inlined_call_operand.hbm [shape: f32[56,28], index: 14, kind: output, shape index: {}]
  %s15 = sld [smem:[#allocation0]]
  $region66: #{dc_gen_t2_forward.1} parent=0
    _
  %s17 = ssub.s32 1, %s15
  %s18 = scalar_select 0, %s17, %s15
  $region1: #{dc_gen_t2_forward.1} parent=0
    #allocation5 [shape = 'u8[28672]{0}', space=vmem, size = 0x7000, scoped, tag = 'output window, operand 0, single buffered']
    #allocation6 [shape = 's32[1]{0}', space=sflag, size = 0x4, scoped, tag = 'scoped memory for dc_gen_t2_forward.1']
    %19 = vsyncpa [#allocation6], 0
    // Predicated region
    $region2: #{dc_gen_t2_forward.1} parent=1 // pred_check
      _
    $region3: #{dc_gen_t2_forward.1} parent=1 // pred_check_branch
      %21 = sbr.rel (0) target = $region5
    $region4: #{dc_gen_t2_forward.1} parent=1 // pred_region
      _
    $region5: #{dc_gen_t2_forward.1} parent=1 // pred_fallthru
      _
    // Predicated region
    $region6: #{dc_gen_t2_forward.1} parent=1 // pred_check
      _
    $region7: #{dc_gen_t2_forward.1} parent=1 // pred_check_branch
      %23 = sbr.rel (0) target = $region9
    $region8: #{dc_gen_t2_forward.1} parent=1 // pred_region
      _
    $region9: #{dc_gen_t2_forward.1} parent=1 // pred_fallthru
      _
    // Predicated region
    $region10: #{dc_gen_t2_forward.1} parent=1 // pred_check
      _
    $region11: #{dc_gen_t2_forward.1} parent=1 // pred_check_branch
      %25 = sbr.rel (0) target = $region13
    $region12: #{dc_gen_t2_forward.1} parent=1 // pred_region
      _
    $region13: #{dc_gen_t2_forward.1} parent=1 // pred_fallthru
      _
    // Predicated region
    $region14: #{dc_gen_t2_forward.1} parent=1 // pred_check
      _
    $region15: #{dc_gen_t2_forward.1} parent=1 // pred_check_branch
      %27 = sbr.rel (0) target = $region17
    $region16: #{dc_gen_t2_forward.1} parent=1 // pred_region
      _
    $region17: #{dc_gen_t2_forward.1} parent=1 // pred_fallthru
      _
    // Predicated region
    $region18: #{dc_gen_t2_forward.1} parent=1 // pred_check
      _
    $region19: #{dc_gen_t2_forward.1} parent=1 // pred_check_branch
      %29 = sbr.rel (0) target = $region21
    $region20: #{dc_gen_t2_forward.1} parent=1 // pred_region
      _
    $region21: #{dc_gen_t2_forward.1} parent=1 // pred_fallthru
      _
    // Predicated region
    $region22: #{dc_gen_t2_forward.1} parent=1 // pred_check
      _
    $region23: #{dc_gen_t2_forward.1} parent=1 // pred_check_branch
      %31 = sbr.rel (0) target = $region25
    $region24: #{dc_gen_t2_forward.1} parent=1 // pred_region
      _
    $region25: #{dc_gen_t2_forward.1} parent=1 // pred_fallthru
      _
    // Predicated region
    $region26: #{dc_gen_t2_forward.1} parent=1 // pred_check
      _
    $region27: #{dc_gen_t2_forward.1} parent=1 // pred_check_branch
      %33 = sbr.rel (0) target = $region29
    $region28: #{dc_gen_t2_forward.1} parent=1 // pred_region
      _
    $region29: #{dc_gen_t2_forward.1} parent=1 // pred_fallthru
      _
    // Predicated region
    $region30: #{dc_gen_t2_forward.1} parent=1 // pred_check
      _
    $region31: #{dc_gen_t2_forward.1} parent=1 // pred_check_branch
      %35 = sbr.rel (0) target = $region33
    $region32: #{dc_gen_t2_forward.1} parent=1 // pred_region
      _
    $region33: #{dc_gen_t2_forward.1} parent=1 // pred_fallthru
      _
    // Predicated region
    $region34: #{dc_gen_t2_forward.1} parent=1 // pred_check
      _
    $region35: #{dc_gen_t2_forward.1} parent=1 // pred_check_branch
      %37 = sbr.rel (0) target = $region37
    $region36: #{dc_gen_t2_forward.1} parent=1 // pred_region
      _
    $region37: #{dc_gen_t2_forward.1} parent=1 // pred_fallthru
      _
    // Predicated region
    $region38: #{dc_gen_t2_forward.1} parent=1 // pred_check
      _
    $region39: #{dc_gen_t2_forward.1} parent=1 // pred_check_branch
      %39 = sbr.rel (0) target = $region41
    $region40: #{dc_gen_t2_forward.1} parent=1 // pred_region
      _
    $region41: #{dc_gen_t2_forward.1} parent=1 // pred_fallthru
      _
    // Predicated region
    $region42: #{dc_gen_t2_forward.1} parent=1 // pred_check
      _
    $region43: #{dc_gen_t2_forward.1} parent=1 // pred_check_branch
      %41 = sbr.rel (0) target = $region45
    $region44: #{dc_gen_t2_forward.1} parent=1 // pred_region
      _
    $region45: #{dc_gen_t2_forward.1} parent=1 // pred_fallthru
      _
    // Predicated region
    $region46: #{dc_gen_t2_forward.1} parent=1 // pred_check
      _
    $region47: #{dc_gen_t2_forward.1} parent=1 // pred_check_branch
      %43 = sbr.rel (0) target = $region49
    $region48: #{dc_gen_t2_forward.1} parent=1 // pred_region
      _
    $region49: #{dc_gen_t2_forward.1} parent=1 // pred_fallthru
      _
    // Predicated region
    $region50: #{dc_gen_t2_forward.1} parent=1 // pred_check
      _
    $region51: #{dc_gen_t2_forward.1} parent=1 // pred_check_branch
      %45 = sbr.rel (0) target = $region53
    $region52: #{dc_gen_t2_forward.1} parent=1 // pred_region
      _
    $region53: #{dc_gen_t2_forward.1} parent=1 // pred_fallthru
      _
    // Predicated region
    $region54: #{dc_gen_t2_forward.1} parent=1 // pred_check
      _
    $region55: #{dc_gen_t2_forward.1} parent=1 // pred_check_branch
      %47 = sbr.rel (0) target = $region57
    $region56: #{dc_gen_t2_forward.1} parent=1 // pred_region
      _
    $region57: #{dc_gen_t2_forward.1} parent=1 // pred_fallthru
      _
    %v48 = vld [vmem:[%s0] sm:$0x3]
    %v49 = vld [vmem:[%s1] sm:$0xff]
    %v50 = vld [vmem:[%s1 + $0x8] sm:$0xff]
    %v51 = vld [vmem:[%s1 + $0x10] sm:$0xff]
    %v52 = vld [vmem:[%s1 + $0x18] sm:$0xff]
    %vm53 = vcmask 130048
    %v55 = vsel %vm53, %v48, 0
    %57 = vmatpush.msra.mxu0 0.0
    %58 = vmatpush.msra.mxu0 0.0
    %59 = vmatpush.msra.mxu0 0.0
    %60 = vmatpush.msra.mxu0 0.0
    %61 = vmatpush.msra.mxu0 0.0
    %62 = vmatpush.msra.mxu0 0.0
    %63 = vmatpush.msra.mxu0 0.0
    %64 = vmatpush.msra.mxu0 0.0
    %65 = vmatpush.msra.mxu0 0.0
    %66 = vmatpush.msra.mxu0 0.0
    %67 = vmatpush.msra.mxu0 0.0
    %68 = vmatpush.msra.mxu0 0.0
    %69 = vmatpush.msra.mxu0 0.0
    %70 = vmatpush.msra.mxu0 0.0
    %71 = vmatpush.msra.mxu0 %v51
    %72 = vmatpush.msra.mxu0 %v49
    %73 = vmatmul.f32.gmra.mxu0 %v55
    %v74 = vpop.f32.mrf.mxu0
    %v75 = vadd.f32 0.0, %v74
    %76 = vdwg.mxu0
    %77 = vmatpush.msra.mxu0 0.0
    %78 = vmatpush.msra.mxu0 0.0
    %79 = vmatpush.msra.mxu0 0.0
    %80 = vmatpush.msra.mxu0 0.0
    %81 = vmatpush.msra.mxu0 0.0
    %82 = vmatpush.msra.mxu0 0.0
    %83 = vmatpush.msra.mxu0 0.0
    %84 = vmatpush.msra.mxu0 0.0
    %85 = vmatpush.msra.mxu0 0.0
    %86 = vmatpush.msra.mxu0 0.0
    %87 = vmatpush.msra.mxu0 0.0
    %88 = vmatpush.msra.mxu0 0.0
    %89 = vmatpush.msra.mxu0 0.0
    %90 = vmatpush.msra.mxu0 0.0
    %91 = vmatpush.msra.mxu0 %v52
    %92 = vmatpush.msra.mxu0 %v50
    %93 = vmatmul.f32.gmra.mxu0 %v55
    %v94 = vpop.f32.mrf.mxu0
    %v95 = vadd.f32 0.0, %v94
    %96 = vdwg.mxu0
    %97 = vst [vmem:[#allocation2] sm:$0x3] %v75
    %vm98 = vcmask 779264
    %99 = vst.msk [vmem:[#allocation2 + $0x8] sm:$0x3] %vm98, %v95
    %s100 = scalar_lea.vmem %s1, 32
    %v101 = vld [vmem:[%s100] sm:$0xff]
    %v102 = vld [vmem:[%s100 + $0x8] sm:$0xff]
    %v103 = vld [vmem:[%s100 + $0x10] sm:$0xff]
    %v104 = vld [vmem:[%s100 + $0x18] sm:$0xff]
    %105 = vmatpush.msra.mxu0 0.0
    %106 = vmatpush.msra.mxu0 0.0
    %107 = vmatpush.msra.mxu0 0.0
    %108 = vmatpush.msra.mxu0 0.0
    %109 = vmatpush.msra.mxu0 0.0
    %110 = vmatpush.msra.mxu0 0.0
    %111 = vmatpush.msra.mxu0 0.0
    %112 = vmatpush.msra.mxu0 0.0
    %113 = vmatpush.msra.mxu0 0.0
    %114 = vmatpush.msra.mxu0 0.0
    %115 = vmatpush.msra.mxu0 0.0
    %116 = vmatpush.msra.mxu0 0.0
    %117 = vmatpush.msra.mxu0 0.0
    %118 = vmatpush.msra.mxu0 0.0
    %119 = vmatpush.msra.mxu0 %v103
    %120 = vmatpush.msra.mxu0 %v101
    %121 = vmatmul.f32.gmra.mxu0 %v55
    %v122 = vpop.f32.mrf.mxu0
    %v123 = vadd.f32 0.0, %v122
    %124 = vdwg.mxu0
    %125 = vmatpush.msra.mxu0 0.0
    %126 = vmatpush.msra.mxu0 0.0
    %127 = vmatpush.msra.mxu0 0.0
    %128 = vmatpush.msra.mxu0 0.0
    %129 = vmatpush.msra.mxu0 0.0
    %130 = vmatpush.msra.mxu0 0.0
    %131 = vmatpush.msra.mxu0 0.0
    %132 = vmatpush.msra.mxu0 0.0
    %133 = vmatpush.msra.mxu0 0.0
    %134 = vmatpush.msra.mxu0 0.0
    %135 = vmatpush.msra.mxu0 0.0
    %136 = vmatpush.msra.mxu0 0.0
    %137 = vmatpush.msra.mxu0 0.0
    %138 = vmatpush.msra.mxu0 0.0
    %139 = vmatpush.msra.mxu0 %v104
    %140 = vmatpush.msra.mxu0 %v102
    %141 = vmatmul.f32.gmra.mxu0 %v55
    %v142 = vpop.f32.mrf.mxu0
    %v143 = vadd.f32 0.0, %v142
    %144 = vdwg.mxu0
    %v147 = vrot.slane %v123, 6
    %v148 = vrot.slane %v143, 6
    %151 = vst [vmem:[#allocation2] sm:$0xc] %v147
    %vm152 = vcmask 781314
    %153 = vst.msk [vmem:[#allocation2 + $0x8] sm:$0xc] %vm152, %v148
    %s154 = scalar_lea.vmem %s1, 64
    %v155 = vld [vmem:[%s154] sm:$0xff]
    %v156 = vld [vmem:[%s154 + $0x8] sm:$0xff]
    %v157 = vld [vmem:[%s154 + $0x10] sm:$0xff]
    %v158 = vld [vmem:[%s154 + $0x18] sm:$0xff]
    %159 = vmatpush.msra.mxu0 0.0
    %160 = vmatpush.msra.mxu0 0.0
    %161 = vmatpush.msra.mxu0 0.0
    %162 = vmatpush.msra.mxu0 0.0
    %163 = vmatpush.msra.mxu0 0.0
    %164 = vmatpush.msra.mxu0 0.0
    %165 = vmatpush.msra.mxu0 0.0
    %166 = vmatpush.msra.mxu0 0.0
    %167 = vmatpush.msra.mxu0 0.0
    %168 = vmatpush.msra.mxu0 0.0
    %169 = vmatpush.msra.mxu0 0.0
    %170 = vmatpush.msra.mxu0 0.0
    %171 = vmatpush.msra.mxu0 0.0
    %172 = vmatpush.msra.mxu0 0.0
    %173 = vmatpush.msra.mxu0 %v157
    %174 = vmatpush.msra.mxu0 %v155
    %175 = vmatmul.f32.gmra.mxu0 %v55
    %v176 = vpop.f32.mrf.mxu0
    %v177 = vadd.f32 0.0, %v176
    %178 = vdwg.mxu0
    %179 = vmatpush.msra.mxu0 0.0
    %180 = vmatpush.msra.mxu0 0.0
    %181 = vmatpush.msra.mxu0 0.0
    %182 = vmatpush.msra.mxu0 0.0
    %183 = vmatpush.msra.mxu0 0.0
    %184 = vmatpush.msra.mxu0 0.0
    %185 = vmatpush.msra.mxu0 0.0
    %186 = vmatpush.msra.mxu0 0.0
    %187 = vmatpush.msra.mxu0 0.0
    %188 = vmatpush.msra.mxu0 0.0
    %189 = vmatpush.msra.mxu0 0.0
    %190 = vmatpush.msra.mxu0 0.0
    %191 = vmatpush.msra.mxu0 0.0
    %192 = vmatpush.msra.mxu0 0.0
    %193 = vmatpush.msra.mxu0 %v158
    %194 = vmatpush.msra.mxu0 %v156
    %195 = vmatmul.f32.gmra.mxu0 %v55
    %v196 = vpop.f32.mrf.mxu0
    %v197 = vadd.f32 0.0, %v196
    %198 = vdwg.mxu0
    %v201 = vrot.slane %v177, 4
    %v202 = vrot.slane %v197, 4
    %205 = vst [vmem:[#allocation2] sm:$0x30] %v201
    %vm206 = vcmask 783364
    %207 = vst.msk [vmem:[#allocation2 + $0x8] sm:$0x30] %vm206, %v202
    %s208 = scalar_lea.vmem %s1, 96
    %v209 = vld [vmem:[%s208] sm:$0xff]
    %v210 = vld [vmem:[%s208 + $0x8] sm:$0xff]
    %v211 = vld [vmem:[%s208 + $0x10] sm:$0xff]
    %v212 = vld [vmem:[%s208 + $0x18] sm:$0xff]
    %213 = vmatpush.msra.mxu0 0.0
    %214 = vmatpush.msra.mxu0 0.0
    %215 = vmatpush.msra.mxu0 0.0
    %216 = vmatpush.msra.mxu0 0.0
    %217 = vmatpush.msra.mxu0 0.0
    %218 = vmatpush.msra.mxu0 0.0
    %219 = vmatpush.msra.mxu0 0.0
    %220 = vmatpush.msra.mxu0 0.0
    %221 = vmatpush.msra.mxu0 0.0
    %222 = vmatpush.msra.mxu0 0.0
    %223 = vmatpush.msra.mxu0 0.0
    %224 = vmatpush.msra.mxu0 0.0
    %225 = vmatpush.msra.mxu0 0.0
    %226 = vmatpush.msra.mxu0 0.0
    %227 = vmatpush.msra.mxu0 %v211
    %228 = vmatpush.msra.mxu0 %v209
    %229 = vmatmul.f32.gmra.mxu0 %v55
    %v230 = vpop.f32.mrf.mxu0
    %v231 = vadd.f32 0.0, %v230
    %232 = vdwg.mxu0
    %233 = vmatpush.msra.mxu0 0.0
    %234 = vmatpush.msra.mxu0 0.0
    %235 = vmatpush.msra.mxu0 0.0
    %236 = vmatpush.msra.mxu0 0.0
    %237 = vmatpush.msra.mxu0 0.0
    %238 = vmatpush.msra.mxu0 0.0
    %239 = vmatpush.msra.mxu0 0.0
    %240 = vmatpush.msra.mxu0 0.0
    %241 = vmatpush.msra.mxu0 0.0
    %242 = vmatpush.msra.mxu0 0.0
    %243 = vmatpush.msra.mxu0 0.0
    %244 = vmatpush.msra.mxu0 0.0
    %245 = vmatpush.msra.mxu0 0.0
    %246 = vmatpush.msra.mxu0 0.0
    %247 = vmatpush.msra.mxu0 %v212
    %248 = vmatpush.msra.mxu0 %v210
    %249 = vmatmul.f32.gmra.mxu0 %v55
    %v250 = vpop.f32.mrf.mxu0
    %v251 = vadd.f32 0.0, %v250
    %252 = vdwg.mxu0
    %v255 = vrot.slane %v231, 2
    %v256 = vrot.slane %v251, 2
    %259 = vst [vmem:[#allocation2] sm:$0xc0] %v255
    %vm260 = vcmask 785414
    %261 = vst.msk [vmem:[#allocation2 + $0x8] sm:$0xc0] %vm260, %v256
    %v262 = vld [vmem:[#allocation2] sm:$0xff]
    %v263 = vld [vmem:[#allocation2 + $0x8] sm:$0xff]
    %v264 = vld [vmem:[%s8] sm:$0xff]
    %v265 = vld [vmem:[%s8 + $0x8] sm:$0xff]
    %v266 = vld [vmem:[%s8 + $0x10] sm:$0xff]
    %v267 = vld [vmem:[%s8 + $0x18] sm:$0xff]
    %v268 = vld [vmem:[%s8 + $0x20] sm:$0xff]
    %v269 = vld [vmem:[%s8 + $0x28] sm:$0xff]
    %v270 = vld [vmem:[%s8 + $0x30] sm:$0xff]
    %v271 = vld [vmem:[%s8 + $0x38] sm:$0xff]
    %v272 = vld [vmem:[%s8 + $0x40] sm:$0xff]
    %v273 = vld [vmem:[%s8 + $0x48] sm:$0xff]
    %v274 = vld [vmem:[%s8 + $0x50] sm:$0xff]
    %v275 = vld [vmem:[%s8 + $0x58] sm:$0xff]
    %v276 = vld [vmem:[%s8 + $0x60] sm:$0xff]
    %v277 = vld [vmem:[%s8 + $0x68] sm:$0xff]
    %v278 = vld [vmem:[%s8 + $0x70] sm:$0xff]
    %v279 = vld [vmem:[%s8 + $0x78] sm:$0xff]
    %v280 = vld [vmem:[%s8 + $0x80] sm:$0xff]
    %v281 = vld [vmem:[%s8 + $0x88] sm:$0xff]
    %v282 = vld [vmem:[%s8 + $0x90] sm:$0xff]
    %v283 = vld [vmem:[%s8 + $0x98] sm:$0xff]
    %v284 = vld [vmem:[%s8 + $0xa0] sm:$0xff]
    %v285 = vld [vmem:[%s8 + $0xa8] sm:$0xff]
    %v286 = vld [vmem:[%s8 + $0xb0] sm:$0xff]
    %v287 = vld [vmem:[%s8 + $0xb8] sm:$0xff]
    %v288 = vld [vmem:[%s8 + $0xc0] sm:$0xff]
    %v289 = vld [vmem:[%s8 + $0xc8] sm:$0xff]
    %v290 = vld [vmem:[%s8 + $0xd0] sm:$0xff]
    %v291 = vld [vmem:[%s8 + $0xd8] sm:$0xff]
    %v292 = vld [vmem:[%s9] sm:$0xff]
    %v293 = vld [vmem:[%s9 + $0x8] sm:$0xff]
    %v294 = vld [vmem:[%s9 + $0x10] sm:$0xff]
    %v295 = vld [vmem:[%s9 + $0x18] sm:$0xff]
    %v296 = vld [vmem:[%s9 + $0x20] sm:$0xff]
    %v297 = vld [vmem:[%s9 + $0x28] sm:$0xff]
    %v298 = vld [vmem:[%s9 + $0x30] sm:$0xff]
    %v299 = vld [vmem:[%s9 + $0x38] sm:$0xff]
    %v300 = vld [vmem:[%s9 + $0x40] sm:$0xff]
    %v301 = vld [vmem:[%s9 + $0x48] sm:$0xff]
    %v302 = vld [vmem:[%s9 + $0x50] sm:$0xff]
    %v303 = vld [vmem:[%s9 + $0x58] sm:$0xff]
    %v304 = vld [vmem:[%s9 + $0x60] sm:$0xff]
    %v305 = vld [vmem:[%s9 + $0x68] sm:$0xff]
    %v306 = vrot.slane %v262, 4
    %v307 = vadd.f32 %v262, %v306
    %v308 = vrot.slane %v307, 2
    %v309 = vadd.f32 %v307, %v308
    %v310 = vrot.slane %v309, 1
    %v311 = vadd.f32 %v309, %v310
    %vm312 = vcmask 785408
    %v313 = vsel %vm312, %v263, 0.0
    %v314 = vrot.slane %v313, 4
    %v315 = vadd.f32 %v313, %v314
    %v316 = vrot.slane %v315, 2
    %v317 = vadd.f32 %v315, %v316
    %v318 = vrot.slane %v317, 1
    %v319 = vadd.f32 %v317, %v318
    %v321 = vsel %vm312, %v319, 0
    %323 = vmatpush.msra.mxu0 %v279
    %324 = vmatpush.msra.mxu0 %v278
    %325 = vmatpush.msra.mxu0 %v277
    %326 = vmatpush.msra.mxu0 %v276
    %327 = vmatpush.msra.mxu0 %v275
    %328 = vmatpush.msra.mxu0 %v274
    %329 = vmatpush.msra.mxu0 %v273
    %330 = vmatpush.msra.mxu0 %v272
    %331 = vmatpush.msra.mxu0 %v271
    %332 = vmatpush.msra.mxu0 %v270
    %333 = vmatpush.msra.mxu0 %v269
    %334 = vmatpush.msra.mxu0 %v268
    %335 = vmatpush.msra.mxu0 %v267
    %336 = vmatpush.msra.mxu0 %v266
    %337 = vmatpush.msra.mxu0 %v265
    %338 = vmatpush.msra.mxu0 %v264
    %339 = vmatmul.f32.gmra.mxu0 %v311
    %v340 = vpop.f32.mrf.mxu0
    %v341 = vadd.f32 0.0, %v340
    %342 = vdwg.mxu0
    %343 = vmatpush.msra.mxu0 0.0
    %344 = vmatpush.msra.mxu0 0.0
    %345 = vmatpush.msra.mxu0 0.0
    %346 = vmatpush.msra.mxu0 0.0
    %347 = vmatpush.msra.mxu0 %v291
    %348 = vmatpush.msra.mxu0 %v290
    %349 = vmatpush.msra.mxu0 %v289
    %350 = vmatpush.msra.mxu0 %v288
    %351 = vmatpush.msra.mxu0 %v287
    %352 = vmatpush.msra.mxu0 %v286
    %353 = vmatpush.msra.mxu0 %v285
    %354 = vmatpush.msra.mxu0 %v284
    %355 = vmatpush.msra.mxu0 %v283
    %356 = vmatpush.msra.mxu0 %v282
    %357 = vmatpush.msra.mxu0 %v281
    %358 = vmatpush.msra.mxu0 %v280
    %359 = vmatmul.f32.gmra.mxu0 %v321
    %v360 = vpop.f32.mrf.mxu0
    %v361 = vadd.f32 %v341, %v360
    %362 = vdwg.mxu0
    %v363 = vrcp.pop 32.0
    %v364 = vmul.f32 32.0, %v363
    %v365 = vsub.f32 1.0, %v364
    %v366 = vmul.f32 %v363, %v365
    %v367 = vadd.f32 %v363, %v366
    %vm368 = vweird.f32 %v363
    %v369 = vsel %vm368, %v363, %v367
    %v370 = vmul.f32 %v361, %v369
    %vm371 = vcmask 457728
    %v373 = vsel %vm371, %v370, 0
    %375 = vmatpush.msra.mxu0 0.0
    %376 = vmatpush.msra.mxu0 0.0
    %377 = vmatpush.msra.mxu0 0.0
    %378 = vmatpush.msra.mxu0 0.0
    %379 = vmatpush.msra.mxu0 0.0
    %380 = vmatpush.msra.mxu0 0.0
    %381 = vmatpush.msra.mxu0 0.0
    %382 = vmatpush.msra.mxu0 0.0
    %383 = vmatpush.msra.mxu0 0.0
    %384 = vmatpush.msra.mxu0 %v304
    %385 = vmatpush.msra.mxu0 %v302
    %386 = vmatpush.msra.mxu0 %v300
    %387 = vmatpush.msra.mxu0 %v298
    %388 = vmatpush.msra.mxu0 %v296
    %389 = vmatpush.msra.mxu0 %v294
    %390 = vmatpush.msra.mxu0 %v292
    %391 = vmatmul.f32.gmra.mxu0 %v373
    %v392 = vpop.f32.mrf.mxu0
    %v393 = vadd.f32 0.0, %v392
    %394 = vdwg.mxu0
    %395 = vmatpush.msra.mxu0 0.0
    %396 = vmatpush.msra.mxu0 0.0
    %397 = vmatpush.msra.mxu0 0.0
    %398 = vmatpush.msra.mxu0 0.0
    %399 = vmatpush.msra.mxu0 0.0
    %400 = vmatpush.msra.mxu0 0.0
    %401 = vmatpush.msra.mxu0 0.0
    %402 = vmatpush.msra.mxu0 0.0
    %403 = vmatpush.msra.mxu0 0.0
    %404 = vmatpush.msra.mxu0 %v305
    %405 = vmatpush.msra.mxu0 %v303
    %406 = vmatpush.msra.mxu0 %v301
    %407 = vmatpush.msra.mxu0 %v299
    %408 = vmatpush.msra.mxu0 %v297
    %409 = vmatpush.msra.mxu0 %v295
    %410 = vmatpush.msra.mxu0 %v293
    %411 = vmatmul.f32.gmra.mxu0 %v373
    %v412 = vpop.f32.mrf.mxu0
    %v413 = vadd.f32 0.0, %v412
    %414 = vdwg.mxu0
    %v415 = vperm.slane %v393, 0
    %v416 = vperm.slane %v413, 0
    %v417 = vsub.f32 %v262, %v415
    %v418 = vsub.f32 %v263, %v416
    %v419 = vmul.f32 %v417, %v417
    %v420 = vmul.f32 %v418, %v418
    %v421 = vrot.slane %v419, 4
    %v422 = vadd.f32 %v419, %v421
    %v423 = vrot.slane %v422, 2
    %v424 = vadd.f32 %v422, %v423
    %v425 = vrot.slane %v424, 1
    %v426 = vadd.f32 %v424, %v425
    %v427 = vsel %vm312, %v420, 0.0
    %v428 = vrot.slane %v427, 4
    %v429 = vadd.f32 %v427, %v428
    %v430 = vrot.slane %v429, 2
    %v431 = vadd.f32 %v429, %v430
    %v432 = vrot.slane %v431, 1
    %v433 = vadd.f32 %v431, %v432
    %v435 = vsel %vm312, %v433, 0
    %437 = vmatpush.msra.mxu0 %v279
    %438 = vmatpush.msra.mxu0 %v278
    %439 = vmatpush.msra.mxu0 %v277
    %440 = vmatpush.msra.mxu0 %v276
    %441 = vmatpush.msra.mxu0 %v275
    %442 = vmatpush.msra.mxu0 %v274
    %443 = vmatpush.msra.mxu0 %v273
    %444 = vmatpush.msra.mxu0 %v272
    %445 = vmatpush.msra.mxu0 %v271
    %446 = vmatpush.msra.mxu0 %v270
    %447 = vmatpush.msra.mxu0 %v269
    %448 = vmatpush.msra.mxu0 %v268
    %449 = vmatpush.msra.mxu0 %v267
    %450 = vmatpush.msra.mxu0 %v266
    %451 = vmatpush.msra.mxu0 %v265
    %452 = vmatpush.msra.mxu0 %v264
    %453 = vmatmul.f32.gmra.mxu0 %v426
    %v454 = vpop.f32.mrf.mxu0
    %v455 = vadd.f32 0.0, %v454
    %456 = vdwg.mxu0
    %457 = vmatpush.msra.mxu0 0.0
    %458 = vmatpush.msra.mxu0 0.0
    %459 = vmatpush.msra.mxu0 0.0
    %460 = vmatpush.msra.mxu0 0.0
    %461 = vmatpush.msra.mxu0 %v291
    %462 = vmatpush.msra.mxu0 %v290
    %463 = vmatpush.msra.mxu0 %v289
    %464 = vmatpush.msra.mxu0 %v288
    %465 = vmatpush.msra.mxu0 %v287
    %466 = vmatpush.msra.mxu0 %v286
    %467 = vmatpush.msra.mxu0 %v285
    %468 = vmatpush.msra.mxu0 %v284
    %469 = vmatpush.msra.mxu0 %v283
    %470 = vmatpush.msra.mxu0 %v282
    %471 = vmatpush.msra.mxu0 %v281
    %472 = vmatpush.msra.mxu0 %v280
    %473 = vmatmul.f32.gmra.mxu0 %v435
    %v474 = vpop.f32.mrf.mxu0
    %v475 = vadd.f32 %v455, %v474
    %476 = vdwg.mxu0
    %v477 = vmul.f32 %v475, %v369
    %v478 = vld [vmem:[%s2] sm:$0x1]
    %v479 = vadd.f32 %v477, 1e-05
    %v480 = vrsqrt.pop %v479
    %v481 = vmul.f32 %v480, %v479
    %v482 = vmul.f32 %v481, %v480
    %v483 = vmul.f32 0.5, %v482
    %v484 = vsub.f32 1.5, %v483
    %v485 = vmul.f32 %v480, %v484
    %vm486 = vweird.f32 %v479
    %vm487 = vweird.f32 %v480
    %vm488 = vmor %vm486, %vm487
    %v489 = vsel %vm488, %v480, %v485
    %v490 = vmul.f32 %v478, %v489
    %v491 = vld [vmem:[%s3] sm:$0x1]
    %v492 = vmul.f32 %v370, %v490
    %v493 = vsub.f32 %v491, %v492
    %v495 = vsel %vm371, %v490, 0
    %497 = vmatpush.msra.mxu0 0.0
    %498 = vmatpush.msra.mxu0 0.0
    %499 = vmatpush.msra.mxu0 0.0
    %500 = vmatpush.msra.mxu0 0.0
    %501 = vmatpush.msra.mxu0 0.0
    %502 = vmatpush.msra.mxu0 0.0
    %503 = vmatpush.msra.mxu0 0.0
    %504 = vmatpush.msra.mxu0 0.0
    %505 = vmatpush.msra.mxu0 0.0
    %506 = vmatpush.msra.mxu0 %v304
    %507 = vmatpush.msra.mxu0 %v302
    %508 = vmatpush.msra.mxu0 %v300
    %509 = vmatpush.msra.mxu0 %v298
    %510 = vmatpush.msra.mxu0 %v296
    %511 = vmatpush.msra.mxu0 %v294
    %512 = vmatpush.msra.mxu0 %v292
    %513 = vmatmul.f32.gmra.mxu0 %v495
    %v514 = vpop.f32.mrf.mxu0
    %v515 = vadd.f32 0.0, %v514
    %516 = vdwg.mxu0
    %517 = vmatpush.msra.mxu0 0.0
    %518 = vmatpush.msra.mxu0 0.0
    %519 = vmatpush.msra.mxu0 0.0
    %520 = vmatpush.msra.mxu0 0.0
    %521 = vmatpush.msra.mxu0 0.0
    %522 = vmatpush.msra.mxu0 0.0
    %523 = vmatpush.msra.mxu0 0.0
    %524 = vmatpush.msra.mxu0 0.0
    %525 = vmatpush.msra.mxu0 0.0
    %526 = vmatpush.msra.mxu0 %v305
    %527 = vmatpush.msra.mxu0 %v303
    %528 = vmatpush.msra.mxu0 %v301
    %529 = vmatpush.msra.mxu0 %v299
    %530 = vmatpush.msra.mxu0 %v297
    %531 = vmatpush.msra.mxu0 %v295
    %532 = vmatpush.msra.mxu0 %v293
    %533 = vmatmul.f32.gmra.mxu0 %v495
    %v534 = vpop.f32.mrf.mxu0
    %v535 = vadd.f32 0.0, %v534
    %536 = vdwg.mxu0
    %v537 = vperm.slane %v515, 0
    %v538 = vperm.slane %v535, 0
    %v539 = vmul.f32 %v262, %v537
    %v540 = vmul.f32 %v263, %v538
    %v542 = vsel %vm371, %v493, 0
    %544 = vmatpush.msra.mxu0 0.0
    %545 = vmatpush.msra.mxu0 0.0
    %546 = vmatpush.msra.mxu0 0.0
    %547 = vmatpush.msra.mxu0 0.0
    %548 = vmatpush.msra.mxu0 0.0
    %549 = vmatpush.msra.mxu0 0.0
    %550 = vmatpush.msra.mxu0 0.0
    %551 = vmatpush.msra.mxu0 0.0
    %552 = vmatpush.msra.mxu0 0.0
    %553 = vmatpush.msra.mxu0 %v304
    %554 = vmatpush.msra.mxu0 %v302
    %555 = vmatpush.msra.mxu0 %v300
    %556 = vmatpush.msra.mxu0 %v298
    %557 = vmatpush.msra.mxu0 %v296
    %558 = vmatpush.msra.mxu0 %v294
    %559 = vmatpush.msra.mxu0 %v292
    %560 = vmatmul.f32.gmra.mxu0 %v542
    %v561 = vpop.f32.mrf.mxu0
    %v562 = vadd.f32 0.0, %v561
    %563 = vdwg.mxu0
    %564 = vmatpush.msra.mxu0 0.0
    %565 = vmatpush.msra.mxu0 0.0
    %566 = vmatpush.msra.mxu0 0.0
    %567 = vmatpush.msra.mxu0 0.0
    %568 = vmatpush.msra.mxu0 0.0
    %569 = vmatpush.msra.mxu0 0.0
    %570 = vmatpush.msra.mxu0 0.0
    %571 = vmatpush.msra.mxu0 0.0
    %572 = vmatpush.msra.mxu0 0.0
    %573 = vmatpush.msra.mxu0 %v305
    %574 = vmatpush.msra.mxu0 %v303
    %575 = vmatpush.msra.mxu0 %v301
    %576 = vmatpush.msra.mxu0 %v299
    %577 = vmatpush.msra.mxu0 %v297
    %578 = vmatpush.msra.mxu0 %v295
    %579 = vmatpush.msra.mxu0 %v293
    %580 = vmatmul.f32.gmra.mxu0 %v542
    %v581 = vpop.f32.mrf.mxu0
    %v582 = vadd.f32 0.0, %v581
    %583 = vdwg.mxu0
    %v584 = vperm.slane %v562, 0
    %v585 = vperm.slane %v582, 0
    %v586 = vadd.f32 %v539, %v584
    %v587 = vadd.f32 %v540, %v585
    %v588 = vmax.f32 %v586, 0.0
    %v589 = vmax.f32 %v587, 0.0
    %v590 = vld [vmem:[%s4] sm:$0xff]
    %v591 = vld [vmem:[%s4 + $0x8] sm:$0xff]
    %v592 = vld [vmem:[%s4 + $0x10] sm:$0xff]
    %v593 = vld [vmem:[%s4 + $0x18] sm:$0xff]
    %v594 = vld [vmem:[%s4 + $0x20] sm:$0xff]
    %v595 = vld [vmem:[%s4 + $0x28] sm:$0xff]
    %v596 = vld [vmem:[%s4 + $0x30] sm:$0xff]
    %v597 = vld [vmem:[%s4 + $0x38] sm:$0xff]
    %v598 = vld [vmem:[%s4 + $0x40] sm:$0xff]
    %v599 = vld [vmem:[%s4 + $0x48] sm:$0xff]
    %v600 = vld [vmem:[%s4 + $0x50] sm:$0xff]
    %v601 = vld [vmem:[%s4 + $0x58] sm:$0xff]
    %v602 = vld [vmem:[%s4 + $0x60] sm:$0xff]
    %v603 = vld [vmem:[%s4 + $0x68] sm:$0xff]
    %v604 = vld [vmem:[%s4 + $0x70] sm:$0xff]
    %v605 = vld [vmem:[%s4 + $0x78] sm:$0xff]
    %v606 = vld [vmem:[%s4 + $0x80] sm:$0xff]
    %v607 = vld [vmem:[%s4 + $0x88] sm:$0xff]
    %v608 = vld [vmem:[%s4 + $0x90] sm:$0xff]
    %v609 = vld [vmem:[%s4 + $0x98] sm:$0xff]
    %v610 = vld [vmem:[%s4 + $0xa0] sm:$0xff]
    %v611 = vld [vmem:[%s4 + $0xa8] sm:$0xff]
    %v612 = vld [vmem:[%s4 + $0xb0] sm:$0xff]
    %v613 = vld [vmem:[%s4 + $0xb8] sm:$0xff]
    %v614 = vld [vmem:[%s4 + $0xc0] sm:$0xff]
    %v615 = vld [vmem:[%s4 + $0xc8] sm:$0xff]
    %v616 = vld [vmem:[%s4 + $0xd0] sm:$0xff]
    %v617 = vld [vmem:[%s4 + $0xd8] sm:$0xff]
    %v618 = vld [vmem:[%s4 + $0xe0] sm:$0xff]
    %v619 = vld [vmem:[%s4 + $0xe8] sm:$0xff]
    %v620 = vld [vmem:[%s4 + $0xf0] sm:$0xff]
    %v621 = vld [vmem:[%s4 + $0xf8] sm:$0xff]
    %v622 = vld [vmem:[%s4 + $0x100] sm:$0xff]
    %v623 = vld [vmem:[%s4 + $0x108] sm:$0xff]
    %v624 = vld [vmem:[%s4 + $0x110] sm:$0xff]
    %v625 = vld [vmem:[%s4 + $0x118] sm:$0xff]
    %v626 = vld [vmem:[%s4 + $0x120] sm:$0xff]
    %v627 = vld [vmem:[%s4 + $0x128] sm:$0xff]
    %v628 = vld [vmem:[%s4 + $0x130] sm:$0xff]
    %v629 = vld [vmem:[%s4 + $0x138] sm:$0xff]
    %v630 = vld [vmem:[%s4 + $0x140] sm:$0xff]
    %v631 = vld [vmem:[%s4 + $0x148] sm:$0xff]
    %v632 = vld [vmem:[%s4 + $0x150] sm:$0xff]
    %v633 = vld [vmem:[%s4 + $0x158] sm:$0xff]
    %v634 = vld [vmem:[%s4 + $0x160] sm:$0xff]
    %v635 = vld [vmem:[%s4 + $0x168] sm:$0xff]
    %v636 = vld [vmem:[%s4 + $0x170] sm:$0xff]
    %v637 = vld [vmem:[%s4 + $0x178] sm:$0xff]
    %v638 = vld [vmem:[%s4 + $0x180] sm:$0xff]
    %v639 = vld [vmem:[%s4 + $0x188] sm:$0xff]
    %v640 = vld [vmem:[%s4 + $0x190] sm:$0xff]
    %v641 = vld [vmem:[%s4 + $0x198] sm:$0xff]
    %v642 = vld [vmem:[%s4 + $0x1a0] sm:$0xff]
    %v643 = vld [vmem:[%s4 + $0x1a8] sm:$0xff]
    %v644 = vld [vmem:[%s4 + $0x1b0] sm:$0xff]
    %v645 = vld [vmem:[%s4 + $0x1b8] sm:$0xff]
    %v646 = vld [vmem:[%s4 + $0x1c0] sm:$0xff]
    %v647 = vld [vmem:[%s4 + $0x1c8] sm:$0xff]
    %v648 = vld [vmem:[%s4 + $0x1d0] sm:$0xff]
    %v649 = vld [vmem:[%s4 + $0x1d8] sm:$0xff]
    %v650 = vld [vmem:[%s4 + $0x1e0] sm:$0xff]
    %v651 = vld [vmem:[%s4 + $0x1e8] sm:$0xff]
    %v652 = vld [vmem:[%s4 + $0x1f0] sm:$0xff]
    %v653 = vld [vmem:[%s4 + $0x1f8] sm:$0xff]
    %v654 = vld [vmem:[%s4 + $0x200] sm:$0xff]
    %v655 = vld [vmem:[%s4 + $0x208] sm:$0xff]
    %v656 = vld [vmem:[%s4 + $0x210] sm:$0xff]
    %v657 = vld [vmem:[%s4 + $0x218] sm:$0xff]
    %v658 = vld [vmem:[%s4 + $0x220] sm:$0xff]
    %v659 = vld [vmem:[%s4 + $0x228] sm:$0xff]
    %v660 = vld [vmem:[%s4 + $0x230] sm:$0xff]
    %v661 = vld [vmem:[%s4 + $0x238] sm:$0xff]
    %v662 = vld [vmem:[%s4 + $0x240] sm:$0xff]
    %v663 = vld [vmem:[%s4 + $0x248] sm:$0xff]
    %v664 = vld [vmem:[%s4 + $0x250] sm:$0xff]
    %v665 = vld [vmem:[%s4 + $0x258] sm:$0xff]
    %v666 = vld [vmem:[%s4 + $0x260] sm:$0xff]
    %v667 = vld [vmem:[%s4 + $0x268] sm:$0xff]
    %v668 = vld [vmem:[%s4 + $0x270] sm:$0xff]
    %v669 = vld [vmem:[%s4 + $0x278] sm:$0xff]
    %v670 = vld [vmem:[%s4 + $0x280] sm:$0xff]
    %v671 = vld [vmem:[%s4 + $0x288] sm:$0xff]
    %v672 = vld [vmem:[%s4 + $0x290] sm:$0xff]
    %v673 = vld [vmem:[%s4 + $0x298] sm:$0xff]
    %v675 = vsel %vm312, %v589, 0
    %677 = vmatpush.msra.mxu0 %v635
    %678 = vmatpush.msra.mxu0 %v632
    %679 = vmatpush.msra.mxu0 %v629
    %680 = vmatpush.msra.mxu0 %v626
    %681 = vmatpush.msra.mxu0 %v623
    %682 = vmatpush.msra.mxu0 %v620
    %683 = vmatpush.msra.mxu0 %v617
    %684 = vmatpush.msra.mxu0 %v614
    %685 = vmatpush.msra.mxu0 %v611
    %686 = vmatpush.msra.mxu0 %v608
    %687 = vmatpush.msra.mxu0 %v605
    %688 = vmatpush.msra.mxu0 %v602
    %689 = vmatpush.msra.mxu0 %v599
    %690 = vmatpush.msra.mxu0 %v596
    %691 = vmatpush.msra.mxu0 %v593
    %692 = vmatpush.msra.mxu0 %v590
    %693 = vmatmul.f32.gmra.mxu0 %v588
    %v694 = vpop.f32.mrf.mxu0
    %v695 = vadd.f32 0.0, %v694
    %696 = vdwg.mxu0
    %697 = vmatpush.msra.mxu0 0.0
    %698 = vmatpush.msra.mxu0 0.0
    %699 = vmatpush.msra.mxu0 0.0
    %700 = vmatpush.msra.mxu0 0.0
    %701 = vmatpush.msra.mxu0 %v671
    %702 = vmatpush.msra.mxu0 %v668
    %703 = vmatpush.msra.mxu0 %v665
    %704 = vmatpush.msra.mxu0 %v662
    %705 = vmatpush.msra.mxu0 %v659
    %706 = vmatpush.msra.mxu0 %v656
    %707 = vmatpush.msra.mxu0 %v653
    %708 = vmatpush.msra.mxu0 %v650
    %709 = vmatpush.msra.mxu0 %v647
    %710 = vmatpush.msra.mxu0 %v644
    %711 = vmatpush.msra.mxu0 %v641
    %712 = vmatpush.msra.mxu0 %v638
    %713 = vmatmul.f32.gmra.mxu0 %v675
    %v714 = vpop.f32.mrf.mxu0
    %v715 = vadd.f32 %v695, %v714
    %716 = vdwg.mxu0
    %717 = vmatpush.msra.mxu0 %v636
    %718 = vmatpush.msra.mxu0 %v633
    %719 = vmatpush.msra.mxu0 %v630
    %720 = vmatpush.msra.mxu0 %v627
    %721 = vmatpush.msra.mxu0 %v624
    %722 = vmatpush.msra.mxu0 %v621
    %723 = vmatpush.msra.mxu0 %v618
    %724 = vmatpush.msra.mxu0 %v615
    %725 = vmatpush.msra.mxu0 %v612
    %726 = vmatpush.msra.mxu0 %v609
    %727 = vmatpush.msra.mxu0 %v606
    %728 = vmatpush.msra.mxu0 %v603
    %729 = vmatpush.msra.mxu0 %v600
    %730 = vmatpush.msra.mxu0 %v597
    %731 = vmatpush.msra.mxu0 %v594
    %732 = vmatpush.msra.mxu0 %v591
    %733 = vmatmul.f32.gmra.mxu0 %v588
    %v734 = vpop.f32.mrf.mxu0
    %v735 = vadd.f32 0.0, %v734
    %736 = vdwg.mxu0
    %737 = vmatpush.msra.mxu0 0.0
    %738 = vmatpush.msra.mxu0 0.0
    %739 = vmatpush.msra.mxu0 0.0
    %740 = vmatpush.msra.mxu0 0.0
    %741 = vmatpush.msra.mxu0 %v672
    %742 = vmatpush.msra.mxu0 %v669
    %743 = vmatpush.msra.mxu0 %v666
    %744 = vmatpush.msra.mxu0 %v663
    %745 = vmatpush.msra.mxu0 %v660
    %746 = vmatpush.msra.mxu0 %v657
    %747 = vmatpush.msra.mxu0 %v654
    %748 = vmatpush.msra.mxu0 %v651
    %749 = vmatpush.msra.mxu0 %v648
    %750 = vmatpush.msra.mxu0 %v645
    %751 = vmatpush.msra.mxu0 %v642
    %752 = vmatpush.msra.mxu0 %v639
    %753 = vmatmul.f32.gmra.mxu0 %v675
    %v754 = vpop.f32.mrf.mxu0
    %v755 = vadd.f32 %v735, %v754
    %756 = vdwg.mxu0
    %757 = vmatpush.msra.mxu0 %v637
    %758 = vmatpush.msra.mxu0 %v634
    %759 = vmatpush.msra.mxu0 %v631
    %760 = vmatpush.msra.mxu0 %v628
    %761 = vmatpush.msra.mxu0 %v625
    %762 = vmatpush.msra.mxu0 %v622
    %763 = vmatpush.msra.mxu0 %v619
    %764 = vmatpush.msra.mxu0 %v616
    %765 = vmatpush.msra.mxu0 %v613
    %766 = vmatpush.msra.mxu0 %v610
    %767 = vmatpush.msra.mxu0 %v607
    %768 = vmatpush.msra.mxu0 %v604
    %769 = vmatpush.msra.mxu0 %v601
    %770 = vmatpush.msra.mxu0 %v598
    %771 = vmatpush.msra.mxu0 %v595
    %772 = vmatpush.msra.mxu0 %v592
    %773 = vmatmul.f32.gmra.mxu0 %v588
    %v774 = vpop.f32.mrf.mxu0
    %v775 = vadd.f32 0.0, %v774
    %776 = vdwg.mxu0
    %777 = vmatpush.msra.mxu0 0.0
    %778 = vmatpush.msra.mxu0 0.0
    %779 = vmatpush.msra.mxu0 0.0
    %780 = vmatpush.msra.mxu0 0.0
    %781 = vmatpush.msra.mxu0 %v673
    %782 = vmatpush.msra.mxu0 %v670
    %783 = vmatpush.msra.mxu0 %v667
    %784 = vmatpush.msra.mxu0 %v664
    %785 = vmatpush.msra.mxu0 %v661
    %786 = vmatpush.msra.mxu0 %v658
    %787 = vmatpush.msra.mxu0 %v655
    %788 = vmatpush.msra.mxu0 %v652
    %789 = vmatpush.msra.mxu0 %v649
    %790 = vmatpush.msra.mxu0 %v646
    %791 = vmatpush.msra.mxu0 %v643
    %792 = vmatpush.msra.mxu0 %v640
    %793 = vmatmul.f32.gmra.mxu0 %v675
    %v794 = vpop.f32.mrf.mxu0
    %v795 = vadd.f32 %v775, %v794
    %796 = vdwg.mxu0
    %797 = vst [vmem:[#allocation3] sm:$0xff] %v715
    %798 = vst [vmem:[#allocation3 + $0x8] sm:$0xff] %v755
    %vm799 = vcmask 195584
    %800 = vst.msk [vmem:[#allocation3 + $0x10] sm:$0xff] %vm799, %v795
    %s801 = scalar_lea.vmem %s4, 672
    %v802 = vld [vmem:[%s801] sm:$0xff]
    %v803 = vld [vmem:[%s801 + $0x8] sm:$0xff]
    %v804 = vld [vmem:[%s801 + $0x10] sm:$0xff]
    %v805 = vld [vmem:[%s801 + $0x18] sm:$0xff]
    %v806 = vld [vmem:[%s801 + $0x20] sm:$0xff]
    %v807 = vld [vmem:[%s801 + $0x28] sm:$0xff]
    %v808 = vld [vmem:[%s801 + $0x30] sm:$0xff]
    %v809 = vld [vmem:[%s801 + $0x38] sm:$0xff]
    %v810 = vld [vmem:[%s801 + $0x40] sm:$0xff]
    %v811 = vld [vmem:[%s801 + $0x48] sm:$0xff]
    %v812 = vld [vmem:[%s801 + $0x50] sm:$0xff]
    %v813 = vld [vmem:[%s801 + $0x58] sm:$0xff]
    %v814 = vld [vmem:[%s801 + $0x60] sm:$0xff]
    %v815 = vld [vmem:[%s801 + $0x68] sm:$0xff]
    %v816 = vld [vmem:[%s801 + $0x70] sm:$0xff]
    %v817 = vld [vmem:[%s801 + $0x78] sm:$0xff]
    %v818 = vld [vmem:[%s801 + $0x80] sm:$0xff]
    %v819 = vld [vmem:[%s801 + $0x88] sm:$0xff]
    %v820 = vld [vmem:[%s801 + $0x90] sm:$0xff]
    %v821 = vld [vmem:[%s801 + $0x98] sm:$0xff]
    %v822 = vld [vmem:[%s801 + $0xa0] sm:$0xff]
    %v823 = vld [vmem:[%s801 + $0xa8] sm:$0xff]
    %v824 = vld [vmem:[%s801 + $0xb0] sm:$0xff]
    %v825 = vld [vmem:[%s801 + $0xb8] sm:$0xff]
    %v826 = vld [vmem:[%s801 + $0xc0] sm:$0xff]
    %v827 = vld [vmem:[%s801 + $0xc8] sm:$0xff]
    %v828 = vld [vmem:[%s801 + $0xd0] sm:$0xff]
    %v829 = vld [vmem:[%s801 + $0xd8] sm:$0xff]
    %v830 = vld [vmem:[%s801 + $0xe0] sm:$0xff]
    %v831 = vld [vmem:[%s801 + $0xe8] sm:$0xff]
    %v832 = vld [vmem:[%s801 + $0xf0] sm:$0xff]
    %v833 = vld [vmem:[%s801 + $0xf8] sm:$0xff]
    %v834 = vld [vmem:[%s801 + $0x100] sm:$0xff]
    %v835 = vld [vmem:[%s801 + $0x108] sm:$0xff]
    %v836 = vld [vmem:[%s801 + $0x110] sm:$0xff]
    %v837 = vld [vmem:[%s801 + $0x118] sm:$0xff]
    %v838 = vld [vmem:[%s801 + $0x120] sm:$0xff]
    %v839 = vld [vmem:[%s801 + $0x128] sm:$0xff]
    %v840 = vld [vmem:[%s801 + $0x130] sm:$0xff]
    %v841 = vld [vmem:[%s801 + $0x138] sm:$0xff]
    %v842 = vld [vmem:[%s801 + $0x140] sm:$0xff]
    %v843 = vld [vmem:[%s801 + $0x148] sm:$0xff]
    %v844 = vld [vmem:[%s801 + $0x150] sm:$0xff]
    %v845 = vld [vmem:[%s801 + $0x158] sm:$0xff]
    %v846 = vld [vmem:[%s801 + $0x160] sm:$0xff]
    %v847 = vld [vmem:[%s801 + $0x168] sm:$0xff]
    %v848 = vld [vmem:[%s801 + $0x170] sm:$0xff]
    %v849 = vld [vmem:[%s801 + $0x178] sm:$0xff]
    %v850 = vld [vmem:[%s801 + $0x180] sm:$0xff]
    %v851 = vld [vmem:[%s801 + $0x188] sm:$0xff]
    %v852 = vld [vmem:[%s801 + $0x190] sm:$0xff]
    %v853 = vld [vmem:[%s801 + $0x198] sm:$0xff]
    %v854 = vld [vmem:[%s801 + $0x1a0] sm:$0xff]
    %v855 = vld [vmem:[%s801 + $0x1a8] sm:$0xff]
    %v856 = vld [vmem:[%s801 + $0x1b0] sm:$0xff]
    %v857 = vld [vmem:[%s801 + $0x1b8] sm:$0xff]
    %v858 = vld [vmem:[%s801 + $0x1c0] sm:$0xff]
    %v859 = vld [vmem:[%s801 + $0x1c8] sm:$0xff]
    %v860 = vld [vmem:[%s801 + $0x1d0] sm:$0xff]
    %v861 = vld [vmem:[%s801 + $0x1d8] sm:$0xff]
    %v862 = vld [vmem:[%s801 + $0x1e0] sm:$0xff]
    %v863 = vld [vmem:[%s801 + $0x1e8] sm:$0xff]
    %v864 = vld [vmem:[%s801 + $0x1f0] sm:$0xff]
    %v865 = vld [vmem:[%s801 + $0x1f8] sm:$0xff]
    %v866 = vld [vmem:[%s801 + $0x200] sm:$0xff]
    %v867 = vld [vmem:[%s801 + $0x208] sm:$0xff]
    %v868 = vld [vmem:[%s801 + $0x210] sm:$0xff]
    %v869 = vld [vmem:[%s801 + $0x218] sm:$0xff]
    %v870 = vld [vmem:[%s801 + $0x220] sm:$0xff]
    %v871 = vld [vmem:[%s801 + $0x228] sm:$0xff]
    %v872 = vld [vmem:[%s801 + $0x230] sm:$0xff]
    %v873 = vld [vmem:[%s801 + $0x238] sm:$0xff]
    %v874 = vld [vmem:[%s801 + $0x240] sm:$0xff]
    %v875 = vld [vmem:[%s801 + $0x248] sm:$0xff]
    %v876 = vld [vmem:[%s801 + $0x250] sm:$0xff]
    %v877 = vld [vmem:[%s801 + $0x258] sm:$0xff]
    %v878 = vld [vmem:[%s801 + $0x260] sm:$0xff]
    %v879 = vld [vmem:[%s801 + $0x268] sm:$0xff]
    %v880 = vld [vmem:[%s801 + $0x270] sm:$0xff]
    %v881 = vld [vmem:[%s801 + $0x278] sm:$0xff]
    %v882 = vld [vmem:[%s801 + $0x280] sm:$0xff]
    %v883 = vld [vmem:[%s801 + $0x288] sm:$0xff]
    %v884 = vld [vmem:[%s801 + $0x290] sm:$0xff]
    %v885 = vld [vmem:[%s801 + $0x298] sm:$0xff]
    %886 = vmatpush.msra.mxu0 %v847
    %887 = vmatpush.msra.mxu0 %v844
    %888 = vmatpush.msra.mxu0 %v841
    %889 = vmatpush.msra.mxu0 %v838
    %890 = vmatpush.msra.mxu0 %v835
    %891 = vmatpush.msra.mxu0 %v832
    %892 = vmatpush.msra.mxu0 %v829
    %893 = vmatpush.msra.mxu0 %v826
    %894 = vmatpush.msra.mxu0 %v823
    %895 = vmatpush.msra.mxu0 %v820
    %896 = vmatpush.msra.mxu0 %v817
    %897 = vmatpush.msra.mxu0 %v814
    %898 = vmatpush.msra.mxu0 %v811
    %899 = vmatpush.msra.mxu0 %v808
    %900 = vmatpush.msra.mxu0 %v805
    %901 = vmatpush.msra.mxu0 %v802
    %902 = vmatmul.f32.gmra.mxu0 %v588
    %v903 = vpop.f32.mrf.mxu0
    %v904 = vadd.f32 0.0, %v903
    %905 = vdwg.mxu0
    %906 = vmatpush.msra.mxu0 0.0
    %907 = vmatpush.msra.mxu0 0.0
    %908 = vmatpush.msra.mxu0 0.0
    %909 = vmatpush.msra.mxu0 0.0
    %910 = vmatpush.msra.mxu0 %v883
    %911 = vmatpush.msra.mxu0 %v880
    %912 = vmatpush.msra.mxu0 %v877
    %913 = vmatpush.msra.mxu0 %v874
    %914 = vmatpush.msra.mxu0 %v871
    %915 = vmatpush.msra.mxu0 %v868
    %916 = vmatpush.msra.mxu0 %v865
    %917 = vmatpush.msra.mxu0 %v862
    %918 = vmatpush.msra.mxu0 %v859
    %919 = vmatpush.msra.mxu0 %v856
    %920 = vmatpush.msra.mxu0 %v853
    %921 = vmatpush.msra.mxu0 %v850
    %922 = vmatmul.f32.gmra.mxu0 %v675
    %v923 = vpop.f32.mrf.mxu0
    %v924 = vadd.f32 %v904, %v923
    %925 = vdwg.mxu0
    %926 = vmatpush.msra.mxu0 %v848
    %927 = vmatpush.msra.mxu0 %v845
    %928 = vmatpush.msra.mxu0 %v842
    %929 = vmatpush.msra.mxu0 %v839
    %930 = vmatpush.msra.mxu0 %v836
    %931 = vmatpush.msra.mxu0 %v833
    %932 = vmatpush.msra.mxu0 %v830
    %933 = vmatpush.msra.mxu0 %v827
    %934 = vmatpush.msra.mxu0 %v824
    %935 = vmatpush.msra.mxu0 %v821
    %936 = vmatpush.msra.mxu0 %v818
    %937 = vmatpush.msra.mxu0 %v815
    %938 = vmatpush.msra.mxu0 %v812
    %939 = vmatpush.msra.mxu0 %v809
    %940 = vmatpush.msra.mxu0 %v806
    %941 = vmatpush.msra.mxu0 %v803
    %942 = vmatmul.f32.gmra.mxu0 %v588
    %v943 = vpop.f32.mrf.mxu0
    %v944 = vadd.f32 0.0, %v943
    %945 = vdwg.mxu0
    %946 = vmatpush.msra.mxu0 0.0
    %947 = vmatpush.msra.mxu0 0.0
    %948 = vmatpush.msra.mxu0 0.0
    %949 = vmatpush.msra.mxu0 0.0
    %950 = vmatpush.msra.mxu0 %v884
    %951 = vmatpush.msra.mxu0 %v881
    %952 = vmatpush.msra.mxu0 %v878
    %953 = vmatpush.msra.mxu0 %v875
    %954 = vmatpush.msra.mxu0 %v872
    %955 = vmatpush.msra.mxu0 %v869
    %956 = vmatpush.msra.mxu0 %v866
    %957 = vmatpush.msra.mxu0 %v863
    %958 = vmatpush.msra.mxu0 %v860
    %959 = vmatpush.msra.mxu0 %v857
    %960 = vmatpush.msra.mxu0 %v854
    %961 = vmatpush.msra.mxu0 %v851
    %962 = vmatmul.f32.gmra.mxu0 %v675
    %v963 = vpop.f32.mrf.mxu0
    %v964 = vadd.f32 %v944, %v963
    %965 = vdwg.mxu0
    %966 = vmatpush.msra.mxu0 %v849
    %967 = vmatpush.msra.mxu0 %v846
    %968 = vmatpush.msra.mxu0 %v843
    %969 = vmatpush.msra.mxu0 %v840
    %970 = vmatpush.msra.mxu0 %v837
    %971 = vmatpush.msra.mxu0 %v834
    %972 = vmatpush.msra.mxu0 %v831
    %973 = vmatpush.msra.mxu0 %v828
    %974 = vmatpush.msra.mxu0 %v825
    %975 = vmatpush.msra.mxu0 %v822
    %976 = vmatpush.msra.mxu0 %v819
    %977 = vmatpush.msra.mxu0 %v816
    %978 = vmatpush.msra.mxu0 %v813
    %979 = vmatpush.msra.mxu0 %v810
    %980 = vmatpush.msra.mxu0 %v807
    %981 = vmatpush.msra.mxu0 %v804
    %982 = vmatmul.f32.gmra.mxu0 %v588
    %v983 = vpop.f32.mrf.mxu0
    %v984 = vadd.f32 0.0, %v983
    %985 = vdwg.mxu0
    %986 = vmatpush.msra.mxu0 0.0
    %987 = vmatpush.msra.mxu0 0.0
    %988 = vmatpush.msra.mxu0 0.0
    %989 = vmatpush.msra.mxu0 0.0
    %990 = vmatpush.msra.mxu0 %v885
    %991 = vmatpush.msra.mxu0 %v882
    %992 = vmatpush.msra.mxu0 %v879
    %993 = vmatpush.msra.mxu0 %v876
    %994 = vmatpush.msra.mxu0 %v873
    %995 = vmatpush.msra.mxu0 %v870
    %996 = vmatpush.msra.mxu0 %v867
    %997 = vmatpush.msra.mxu0 %v864
    %998 = vmatpush.msra.mxu0 %v861
    %999 = vmatpush.msra.mxu0 %v858
    %1000 = vmatpush.msra.mxu0 %v855
    %1001 = vmatpush.msra.mxu0 %v852
    %1002 = vmatmul.f32.gmra.mxu0 %v675
    %v1003 = vpop.f32.mrf.mxu0
    %v1004 = vadd.f32 %v984, %v1003
    %1005 = vdwg.mxu0
    %1006 = vst [vmem:[#allocation3 + $0x18] sm:$0xff] %v924
    %1007 = vst [vmem:[#allocation3 + $0x20] sm:$0xff] %v964
    %1008 = vst.msk [vmem:[#allocation3 + $0x28] sm:$0xff] %vm799, %v1004
    %s1009 = scalar_lea.vmem %s4, 1344
    %v1010 = vld [vmem:[%s1009] sm:$0xff]
    %v1011 = vld [vmem:[%s1009 + $0x8] sm:$0xff]
    %v1012 = vld [vmem:[%s1009 + $0x10] sm:$0xff]
    %v1013 = vld [vmem:[%s1009 + $0x18] sm:$0xff]
    %v1014 = vld [vmem:[%s1009 + $0x20] sm:$0xff]
    %v1015 = vld [vmem:[%s1009 + $0x28] sm:$0xff]
    %v1016 = vld [vmem:[%s1009 + $0x30] sm:$0xff]
    %v1017 = vld [vmem:[%s1009 + $0x38] sm:$0xff]
    %v1018 = vld [vmem:[%s1009 + $0x40] sm:$0xff]
    %v1019 = vld [vmem:[%s1009 + $0x48] sm:$0xff]
    %v1020 = vld [vmem:[%s1009 + $0x50] sm:$0xff]
    %v1021 = vld [vmem:[%s1009 + $0x58] sm:$0xff]
    %v1022 = vld [vmem:[%s1009 + $0x60] sm:$0xff]
    %v1023 = vld [vmem:[%s1009 + $0x68] sm:$0xff]
    %v1024 = vld [vmem:[%s1009 + $0x70] sm:$0xff]
    %v1025 = vld [vmem:[%s1009 + $0x78] sm:$0xff]
    %v1026 = vld [vmem:[%s1009 + $0x80] sm:$0xff]
    %v1027 = vld [vmem:[%s1009 + $0x88] sm:$0xff]
    %v1028 = vld [vmem:[%s1009 + $0x90] sm:$0xff]
    %v1029 = vld [vmem:[%s1009 + $0x98] sm:$0xff]
    %v1030 = vld [vmem:[%s1009 + $0xa0] sm:$0xff]
    %v1031 = vld [vmem:[%s1009 + $0xa8] sm:$0xff]
    %v1032 = vld [vmem:[%s1009 + $0xb0] sm:$0xff]
    %v1033 = vld [vmem:[%s1009 + $0xb8] sm:$0xff]
    %v1034 = vld [vmem:[%s1009 + $0xc0] sm:$0xff]
    %v1035 = vld [vmem:[%s1009 + $0xc8] sm:$0xff]
    %v1036 = vld [vmem:[%s1009 + $0xd0] sm:$0xff]
    %v1037 = vld [vmem:[%s1009 + $0xd8] sm:$0xff]
    %v1038 = vld [vmem:[%s1009 + $0xe0] sm:$0xff]
    %v1039 = vld [vmem:[%s1009 + $0xe8] sm:$0xff]
    %v1040 = vld [vmem:[%s1009 + $0xf0] sm:$0xff]
    %v1041 = vld [vmem:[%s1009 + $0xf8] sm:$0xff]
    %v1042 = vld [vmem:[%s1009 + $0x100] sm:$0xff]
    %v1043 = vld [vmem:[%s1009 + $0x108] sm:$0xff]
    %v1044 = vld [vmem:[%s1009 + $0x110] sm:$0xff]
    %v1045 = vld [vmem:[%s1009 + $0x118] sm:$0xff]
    %v1046 = vld [vmem:[%s1009 + $0x120] sm:$0xff]
    %v1047 = vld [vmem:[%s1009 + $0x128] sm:$0xff]
    %v1048 = vld [vmem:[%s1009 + $0x130] sm:$0xff]
    %v1049 = vld [vmem:[%s1009 + $0x138] sm:$0xff]
    %v1050 = vld [vmem:[%s1009 + $0x140] sm:$0xff]
    %v1051 = vld [vmem:[%s1009 + $0x148] sm:$0xff]
    %v1052 = vld [vmem:[%s1009 + $0x150] sm:$0xff]
    %v1053 = vld [vmem:[%s1009 + $0x158] sm:$0xff]
    %v1054 = vld [vmem:[%s1009 + $0x160] sm:$0xff]
    %v1055 = vld [vmem:[%s1009 + $0x168] sm:$0xff]
    %v1056 = vld [vmem:[%s1009 + $0x170] sm:$0xff]
    %v1057 = vld [vmem:[%s1009 + $0x178] sm:$0xff]
    %v1058 = vld [vmem:[%s1009 + $0x180] sm:$0xff]
    %v1059 = vld [vmem:[%s1009 + $0x188] sm:$0xff]
    %v1060 = vld [vmem:[%s1009 + $0x190] sm:$0xff]
    %v1061 = vld [vmem:[%s1009 + $0x198] sm:$0xff]
    %v1062 = vld [vmem:[%s1009 + $0x1a0] sm:$0xff]
    %v1063 = vld [vmem:[%s1009 + $0x1a8] sm:$0xff]
    %v1064 = vld [vmem:[%s1009 + $0x1b0] sm:$0xff]
    %v1065 = vld [vmem:[%s1009 + $0x1b8] sm:$0xff]
    %v1066 = vld [vmem:[%s1009 + $0x1c0] sm:$0xff]
    %v1067 = vld [vmem:[%s1009 + $0x1c8] sm:$0xff]
    %v1068 = vld [vmem:[%s1009 + $0x1d0] sm:$0xff]
    %v1069 = vld [vmem:[%s1009 + $0x1d8] sm:$0xff]
    %v1070 = vld [vmem:[%s1009 + $0x1e0] sm:$0xff]
    %v1071 = vld [vmem:[%s1009 + $0x1e8] sm:$0xff]
    %v1072 = vld [vmem:[%s1009 + $0x1f0] sm:$0xff]
    %v1073 = vld [vmem:[%s1009 + $0x1f8] sm:$0xff]
    %v1074 = vld [vmem:[%s1009 + $0x200] sm:$0xff]
    %v1075 = vld [vmem:[%s1009 + $0x208] sm:$0xff]
    %v1076 = vld [vmem:[%s1009 + $0x210] sm:$0xff]
    %v1077 = vld [vmem:[%s1009 + $0x218] sm:$0xff]
    %v1078 = vld [vmem:[%s1009 + $0x220] sm:$0xff]
    %v1079 = vld [vmem:[%s1009 + $0x228] sm:$0xff]
    %v1080 = vld [vmem:[%s1009 + $0x230] sm:$0xff]
    %v1081 = vld [vmem:[%s1009 + $0x238] sm:$0xff]
    %v1082 = vld [vmem:[%s1009 + $0x240] sm:$0xff]
    %v1083 = vld [vmem:[%s1009 + $0x248] sm:$0xff]
    %v1084 = vld [vmem:[%s1009 + $0x250] sm:$0xff]
    %v1085 = vld [vmem:[%s1009 + $0x258] sm:$0xff]
    %v1086 = vld [vmem:[%s1009 + $0x260] sm:$0xff]
    %v1087 = vld [vmem:[%s1009 + $0x268] sm:$0xff]
    %v1088 = vld [vmem:[%s1009 + $0x270] sm:$0xff]
    %v1089 = vld [vmem:[%s1009 + $0x278] sm:$0xff]
    %v1090 = vld [vmem:[%s1009 + $0x280] sm:$0xff]
    %v1091 = vld [vmem:[%s1009 + $0x288] sm:$0xff]
    %v1092 = vld [vmem:[%s1009 + $0x290] sm:$0xff]
    %v1093 = vld [vmem:[%s1009 + $0x298] sm:$0xff]
    %1094 = vmatpush.msra.mxu0 %v1055
    %1095 = vmatpush.msra.mxu0 %v1052
    %1096 = vmatpush.msra.mxu0 %v1049
    %1097 = vmatpush.msra.mxu0 %v1046
    %1098 = vmatpush.msra.mxu0 %v1043
    %1099 = vmatpush.msra.mxu0 %v1040
    %1100 = vmatpush.msra.mxu0 %v1037
    %1101 = vmatpush.msra.mxu0 %v1034
    %1102 = vmatpush.msra.mxu0 %v1031
    %1103 = vmatpush.msra.mxu0 %v1028
    %1104 = vmatpush.msra.mxu0 %v1025
    %1105 = vmatpush.msra.mxu0 %v1022
    %1106 = vmatpush.msra.mxu0 %v1019
    %1107 = vmatpush.msra.mxu0 %v1016
    %1108 = vmatpush.msra.mxu0 %v1013
    %1109 = vmatpush.msra.mxu0 %v1010
    %1110 = vmatmul.f32.gmra.mxu0 %v588
    %v1111 = vpop.f32.mrf.mxu0
    %v1112 = vadd.f32 0.0, %v1111
    %1113 = vdwg.mxu0
    %1114 = vmatpush.msra.mxu0 0.0
    %1115 = vmatpush.msra.mxu0 0.0
    %1116 = vmatpush.msra.mxu0 0.0
    %1117 = vmatpush.msra.mxu0 0.0
    %1118 = vmatpush.msra.mxu0 %v1091
    %1119 = vmatpush.msra.mxu0 %v1088
    %1120 = vmatpush.msra.mxu0 %v1085
    %1121 = vmatpush.msra.mxu0 %v1082
    %1122 = vmatpush.msra.mxu0 %v1079
    %1123 = vmatpush.msra.mxu0 %v1076
    %1124 = vmatpush.msra.mxu0 %v1073
    %1125 = vmatpush.msra.mxu0 %v1070
    %1126 = vmatpush.msra.mxu0 %v1067
    %1127 = vmatpush.msra.mxu0 %v1064
    %1128 = vmatpush.msra.mxu0 %v1061
    %1129 = vmatpush.msra.mxu0 %v1058
    %1130 = vmatmul.f32.gmra.mxu0 %v675
    %v1131 = vpop.f32.mrf.mxu0
    %v1132 = vadd.f32 %v1112, %v1131
    %1133 = vdwg.mxu0
    %1134 = vmatpush.msra.mxu0 %v1056
    %1135 = vmatpush.msra.mxu0 %v1053
    %1136 = vmatpush.msra.mxu0 %v1050
    %1137 = vmatpush.msra.mxu0 %v1047
    %1138 = vmatpush.msra.mxu0 %v1044
    %1139 = vmatpush.msra.mxu0 %v1041
    %1140 = vmatpush.msra.mxu0 %v1038
    %1141 = vmatpush.msra.mxu0 %v1035
    %1142 = vmatpush.msra.mxu0 %v1032
    %1143 = vmatpush.msra.mxu0 %v1029
    %1144 = vmatpush.msra.mxu0 %v1026
    %1145 = vmatpush.msra.mxu0 %v1023
    %1146 = vmatpush.msra.mxu0 %v1020
    %1147 = vmatpush.msra.mxu0 %v1017
    %1148 = vmatpush.msra.mxu0 %v1014
    %1149 = vmatpush.msra.mxu0 %v1011
    %1150 = vmatmul.f32.gmra.mxu0 %v588
    %v1151 = vpop.f32.mrf.mxu0
    %v1152 = vadd.f32 0.0, %v1151
    %1153 = vdwg.mxu0
    %1154 = vmatpush.msra.mxu0 0.0
    %1155 = vmatpush.msra.mxu0 0.0
    %1156 = vmatpush.msra.mxu0 0.0
    %1157 = vmatpush.msra.mxu0 0.0
    %1158 = vmatpush.msra.mxu0 %v1092
    %1159 = vmatpush.msra.mxu0 %v1089
    %1160 = vmatpush.msra.mxu0 %v1086
    %1161 = vmatpush.msra.mxu0 %v1083
    %1162 = vmatpush.msra.mxu0 %v1080
    %1163 = vmatpush.msra.mxu0 %v1077
    %1164 = vmatpush.msra.mxu0 %v1074
    %1165 = vmatpush.msra.mxu0 %v1071
    %1166 = vmatpush.msra.mxu0 %v1068
    %1167 = vmatpush.msra.mxu0 %v1065
    %1168 = vmatpush.msra.mxu0 %v1062
    %1169 = vmatpush.msra.mxu0 %v1059
    %1170 = vmatmul.f32.gmra.mxu0 %v675
    %v1171 = vpop.f32.mrf.mxu0
    %v1172 = vadd.f32 %v1152, %v1171
    %1173 = vdwg.mxu0
    %1174 = vmatpush.msra.mxu0 %v1057
    %1175 = vmatpush.msra.mxu0 %v1054
    %1176 = vmatpush.msra.mxu0 %v1051
    %1177 = vmatpush.msra.mxu0 %v1048
    %1178 = vmatpush.msra.mxu0 %v1045
    %1179 = vmatpush.msra.mxu0 %v1042
    %1180 = vmatpush.msra.mxu0 %v1039
    %1181 = vmatpush.msra.mxu0 %v1036
    %1182 = vmatpush.msra.mxu0 %v1033
    %1183 = vmatpush.msra.mxu0 %v1030
    %1184 = vmatpush.msra.mxu0 %v1027
    %1185 = vmatpush.msra.mxu0 %v1024
    %1186 = vmatpush.msra.mxu0 %v1021
    %1187 = vmatpush.msra.mxu0 %v1018
    %1188 = vmatpush.msra.mxu0 %v1015
    %1189 = vmatpush.msra.mxu0 %v1012
    %1190 = vmatmul.f32.gmra.mxu0 %v588
    %v1191 = vpop.f32.mrf.mxu0
    %v1192 = vadd.f32 0.0, %v1191
    %1193 = vdwg.mxu0
    %1194 = vmatpush.msra.mxu0 0.0
    %1195 = vmatpush.msra.mxu0 0.0
    %1196 = vmatpush.msra.mxu0 0.0
    %1197 = vmatpush.msra.mxu0 0.0
    %1198 = vmatpush.msra.mxu0 %v1093
    %1199 = vmatpush.msra.mxu0 %v1090
    %1200 = vmatpush.msra.mxu0 %v1087
    %1201 = vmatpush.msra.mxu0 %v1084
    %1202 = vmatpush.msra.mxu0 %v1081
    %1203 = vmatpush.msra.mxu0 %v1078
    %1204 = vmatpush.msra.mxu0 %v1075
    %1205 = vmatpush.msra.mxu0 %v1072
    %1206 = vmatpush.msra.mxu0 %v1069
    %1207 = vmatpush.msra.mxu0 %v1066
    %1208 = vmatpush.msra.mxu0 %v1063
    %1209 = vmatpush.msra.mxu0 %v1060
    %1210 = vmatmul.f32.gmra.mxu0 %v675
    %v1211 = vpop.f32.mrf.mxu0
    %v1212 = vadd.f32 %v1192, %v1211
    %1213 = vdwg.mxu0
    %1214 = vst [vmem:[#allocation3 + $0x30] sm:$0xff] %v1132
    %1215 = vst [vmem:[#allocation3 + $0x38] sm:$0xff] %v1172
    %1216 = vst.msk [vmem:[#allocation3 + $0x40] sm:$0xff] %vm799, %v1212
    %v1217 = vld [vmem:[#allocation3] sm:$0xff]
    %v1218 = vld [vmem:[#allocation3 + $0x8] sm:$0xff]
    %v1219 = vld [vmem:[#allocation3 + $0x10] sm:$0xff]
    %v1220 = vld [vmem:[#allocation3 + $0x18] sm:$0xff]
    %v1221 = vld [vmem:[#allocation3 + $0x20] sm:$0xff]
    %v1222 = vld [vmem:[#allocation3 + $0x28] sm:$0xff]
    %v1223 = vld [vmem:[#allocation3 + $0x30] sm:$0xff]
    %v1224 = vld [vmem:[#allocation3 + $0x38] sm:$0xff]
    %v1225 = vld [vmem:[#allocation3 + $0x40] sm:$0xff]
    %v1226 = vld [vmem:[%s12] sm:$0xff]
    %v1227 = vld [vmem:[%s12 + $0x8] sm:$0xff]
    %v1228 = vld [vmem:[%s12 + $0x10] sm:$0xff]
    %v1229 = vld [vmem:[%s10] sm:$0xff]
    %v1230 = vld [vmem:[%s10 + $0x8] sm:$0xff]
    %v1231 = vld [vmem:[%s10 + $0x10] sm:$0xff]
    %v1232 = vld [vmem:[%s10 + $0x18] sm:$0xff]
    %v1233 = vld [vmem:[%s10 + $0x20] sm:$0xff]
    %v1234 = vld [vmem:[%s10 + $0x28] sm:$0xff]
    %v1235 = vld [vmem:[%s10 + $0x30] sm:$0xff]
    %v1236 = vld [vmem:[%s10 + $0x38] sm:$0xff]
    %v1237 = vld [vmem:[%s10 + $0x40] sm:$0xff]
    %v1238 = vld [vmem:[%s10 + $0x48] sm:$0xff]
    %v1239 = vld [vmem:[%s10 + $0x50] sm:$0xff]
    %v1240 = vld [vmem:[%s10 + $0x58] sm:$0xff]
    %v1241 = vld [vmem:[%s10 + $0x60] sm:$0xff]
    %v1242 = vld [vmem:[%s10 + $0x68] sm:$0xff]
    %v1243 = vld [vmem:[%s10 + $0x70] sm:$0xff]
    %v1244 = vld [vmem:[%s10 + $0x78] sm:$0xff]
    %v1245 = vld [vmem:[%s10 + $0x80] sm:$0xff]
    %v1246 = vld [vmem:[%s10 + $0x88] sm:$0xff]
    %v1247 = vld [vmem:[%s10 + $0x90] sm:$0xff]
    %v1248 = vld [vmem:[%s10 + $0x98] sm:$0xff]
    %v1249 = vld [vmem:[%s10 + $0xa0] sm:$0xff]
    %v1250 = vld [vmem:[%s10 + $0xa8] sm:$0xff]
    %v1251 = vld [vmem:[%s10 + $0xb0] sm:$0xff]
    %v1252 = vld [vmem:[%s10 + $0xb8] sm:$0xff]
    %v1253 = vld [vmem:[%s10 + $0xc0] sm:$0xff]
    %v1254 = vld [vmem:[%s10 + $0xc8] sm:$0xff]
    %v1255 = vld [vmem:[%s10 + $0xd0] sm:$0xff]
    %v1256 = vld [vmem:[%s10 + $0xd8] sm:$0xff]
    %v1257 = vld [vmem:[%s10 + $0xe0] sm:$0xff]
    %v1258 = vld [vmem:[%s10 + $0xe8] sm:$0xff]
    %v1259 = vld [vmem:[%s10 + $0xf0] sm:$0xff]
    %v1260 = vld [vmem:[%s10 + $0xf8] sm:$0xff]
    %v1261 = vld [vmem:[%s10 + $0x100] sm:$0xff]
    %v1262 = vld [vmem:[%s10 + $0x108] sm:$0xff]
    %v1263 = vld [vmem:[%s10 + $0x110] sm:$0xff]
    %v1264 = vld [vmem:[%s11] sm:$0xff]
    %v1265 = vld [vmem:[%s11 + $0x8] sm:$0xff]
    %v1266 = vld [vmem:[%s11 + $0x10] sm:$0xff]
    %v1267 = vld [vmem:[%s11 + $0x18] sm:$0xff]
    %v1268 = vld [vmem:[%s11 + $0x20] sm:$0xff]
    %v1269 = vld [vmem:[%s11 + $0x28] sm:$0xff]
    %v1270 = vld [vmem:[%s11 + $0x30] sm:$0xff]
    %v1271 = vld [vmem:[%s11 + $0x38] sm:$0xff]
    %v1272 = vld [vmem:[%s11 + $0x40] sm:$0xff]
    %v1273 = vld [vmem:[%s11 + $0x48] sm:$0xf]
    %v1274 = vld [vmem:[%s11 + $0x50] sm:$0xf]
    %v1275 = vld [vmem:[%s11 + $0x58] sm:$0xf]
    %1277 = vset.pattern.permute.xlu0 0
    %1278 = vperm.xlu0 %1277, %v1226
    %v1279 = vpop.permute.xlu0 %1278
    %1282 = vset.pattern.permute.xlu0 0
    %1283 = vperm.xlu0 %1282, %v1227
    %v1284 = vpop.permute.xlu0 %1283
    %1287 = vset.pattern.permute.xlu0 0
    %1288 = vperm.xlu0 %1287, %v1228
    %v1289 = vpop.permute.xlu0 %1288
    %v1291 = vmul.f32 %v1217, %v1279
    %v1292 = vmul.f32 %v1218, %v1279
    %v1293 = vmul.f32 %v1219, %v1279
    %v1294 = vmul.f32 %v1220, %v1284
    %v1295 = vmul.f32 %v1221, %v1284
    %v1296 = vmul.f32 %v1222, %v1284
    %v1297 = vmul.f32 %v1223, %v1289
    %v1298 = vmul.f32 %v1224, %v1289
    %v1299 = vmul.f32 %v1225, %v1289
    %v1300 = vadd.f32 %v1291, %v1294
    %v1301 = vadd.f32 %v1300, %v1297
    %v1302 = vrot.slane %v1301, 4
    %v1303 = vadd.f32 %v1301, %v1302
    %v1304 = vrot.slane %v1303, 2
    %v1305 = vadd.f32 %v1303, %v1304
    %v1306 = vrot.slane %v1305, 1
    %v1307 = vadd.f32 %v1305, %v1306
    %v1308 = vadd.f32 %v1292, %v1295
    %v1309 = vadd.f32 %v1308, %v1298
    %v1310 = vrot.slane %v1309, 4
    %v1311 = vadd.f32 %v1309, %v1310
    %v1312 = vrot.slane %v1311, 2
    %v1313 = vadd.f32 %v1311, %v1312
    %v1314 = vrot.slane %v1313, 1
    %v1315 = vadd.f32 %v1313, %v1314
    %v1316 = vsel %vm799, %v1293, 0.0
    %v1317 = vsel %vm799, %v1296, 0.0
    %v1318 = vadd.f32 %v1316, %v1317
    %v1319 = vsel %vm799, %v1299, 0.0
    %v1320 = vadd.f32 %v1318, %v1319
    %v1321 = vrot.slane %v1320, 4
    %v1322 = vadd.f32 %v1320, %v1321
    %v1323 = vrot.slane %v1322, 2
    %v1324 = vadd.f32 %v1322, %v1323
    %v1325 = vrot.slane %v1324, 1
    %v1326 = vadd.f32 %v1324, %v1325
    %v1328 = vsel %vm799, %v1326, 0
    %1330 = vmatpush.msra.mxu0 %v1244
    %1331 = vmatpush.msra.mxu0 %v1243
    %1332 = vmatpush.msra.mxu0 %v1242
    %1333 = vmatpush.msra.mxu0 %v1241
    %1334 = vmatpush.msra.mxu0 %v1240
    %1335 = vmatpush.msra.mxu0 %v1239
    %1336 = vmatpush.msra.mxu0 %v1238
    %1337 = vmatpush.msra.mxu0 %v1237
    %1338 = vmatpush.msra.mxu0 %v1236
    %1339 = vmatpush.msra.mxu0 %v1235
    %1340 = vmatpush.msra.mxu0 %v1234
    %1341 = vmatpush.msra.mxu0 %v1233
    %1342 = vmatpush.msra.mxu0 %v1232
    %1343 = vmatpush.msra.mxu0 %v1231
    %1344 = vmatpush.msra.mxu0 %v1230
    %1345 = vmatpush.msra.mxu0 %v1229
    %1346 = vmatmul.f32.gmra.mxu0 %v1307
    %v1347 = vpop.f32.mrf.mxu0
    %v1348 = vadd.f32 0.0, %v1347
    %1349 = vdwg.mxu0
    %1350 = vmatpush.msra.mxu0 %v1260
    %1351 = vmatpush.msra.mxu0 %v1259
    %1352 = vmatpush.msra.mxu0 %v1258
    %1353 = vmatpush.msra.mxu0 %v1257
    %1354 = vmatpush.msra.mxu0 %v1256
    %1355 = vmatpush.msra.mxu0 %v1255
    %1356 = vmatpush.msra.mxu0 %v1254
    %1357 = vmatpush.msra.mxu0 %v1253
    %1358 = vmatpush.msra.mxu0 %v1252
    %1359 = vmatpush.msra.mxu0 %v1251
    %1360 = vmatpush.msra.mxu0 %v1250
    %1361 = vmatpush.msra.mxu0 %v1249
    %1362 = vmatpush.msra.mxu0 %v1248
    %1363 = vmatpush.msra.mxu0 %v1247
    %1364 = vmatpush.msra.mxu0 %v1246
    %1365 = vmatpush.msra.mxu0 %v1245
    %1366 = vmatmul.f32.gmra.mxu0 %v1315
    %v1367 = vpop.f32.mrf.mxu0
    %v1368 = vadd.f32 %v1348, %v1367
    %1369 = vdwg.mxu0
    %1370 = vmatpush.msra.mxu0 0.0
    %1371 = vmatpush.msra.mxu0 0.0
    %1372 = vmatpush.msra.mxu0 0.0
    %1373 = vmatpush.msra.mxu0 0.0
    %1374 = vmatpush.msra.mxu0 0.0
    %1375 = vmatpush.msra.mxu0 0.0
    %1376 = vmatpush.msra.mxu0 0.0
    %1377 = vmatpush.msra.mxu0 0.0
    %1378 = vmatpush.msra.mxu0 0.0
    %1379 = vmatpush.msra.mxu0 0.0
    %1380 = vmatpush.msra.mxu0 0.0
    %1381 = vmatpush.msra.mxu0 0.0
    %1382 = vmatpush.msra.mxu0 0.0
    %1383 = vmatpush.msra.mxu0 %v1263
    %1384 = vmatpush.msra.mxu0 %v1262
    %1385 = vmatpush.msra.mxu0 %v1261
    %1386 = vmatmul.f32.gmra.mxu0 %v1328
    %v1387 = vpop.f32.mrf.mxu0
    %v1388 = vadd.f32 %v1368, %v1387
    %1389 = vdwg.mxu0
    %v1390 = vrcp.pop 200.0
    %v1391 = vmul.f32 200.0, %v1390
    %v1392 = vsub.f32 1.0, %v1391
    %v1393 = vmul.f32 %v1390, %v1392
    %v1394 = vadd.f32 %v1390, %v1393
    %vm1395 = vweird.f32 %v1390
    %v1396 = vsel %vm1395, %v1390, %v1394
    %v1397 = vmul.f32 %v1388, %v1396
    %vm1398 = vcmask 228352
    %v1400 = vsel %vm1398, %v1397, 0
    %vm1402 = vcmask 1043456
    %v1404 = vsel %vm1402, %v1273, 0
    %v1407 = vsel %vm1402, %v1274, 0
    %v1410 = vsel %vm1402, %v1275, 0
    %1412 = vmatpush.msra.mxu0 0.0
    %1413 = vmatpush.msra.mxu0 0.0
    %1414 = vmatpush.msra.mxu0 0.0
    %1415 = vmatpush.msra.mxu0 0.0
    %1416 = vmatpush.msra.mxu0 0.0
    %1417 = vmatpush.msra.mxu0 0.0
    %1418 = vmatpush.msra.mxu0 0.0
    %1419 = vmatpush.msra.mxu0 0.0
    %1420 = vmatpush.msra.mxu0 0.0
    %1421 = vmatpush.msra.mxu0 0.0
    %1422 = vmatpush.msra.mxu0 0.0
    %1423 = vmatpush.msra.mxu0 0.0
    %1424 = vmatpush.msra.mxu0 %v1404
    %1425 = vmatpush.msra.mxu0 %v1270
    %1426 = vmatpush.msra.mxu0 %v1267
    %1427 = vmatpush.msra.mxu0 %v1264
    %1428 = vmatmul.f32.gmra.mxu0 %v1400
    %v1429 = vpop.f32.mrf.mxu0
    %v1430 = vadd.f32 0.0, %v1429
    %1431 = vdwg.mxu0
    %1432 = vmatpush.msra.mxu0 0.0
    %1433 = vmatpush.msra.mxu0 0.0
    %1434 = vmatpush.msra.mxu0 0.0
    %1435 = vmatpush.msra.mxu0 0.0
    %1436 = vmatpush.msra.mxu0 0.0
    %1437 = vmatpush.msra.mxu0 0.0
    %1438 = vmatpush.msra.mxu0 0.0
    %1439 = vmatpush.msra.mxu0 0.0
    %1440 = vmatpush.msra.mxu0 0.0
    %1441 = vmatpush.msra.mxu0 0.0
    %1442 = vmatpush.msra.mxu0 0.0
    %1443 = vmatpush.msra.mxu0 0.0
    %1444 = vmatpush.msra.mxu0 %v1407
    %1445 = vmatpush.msra.mxu0 %v1271
    %1446 = vmatpush.msra.mxu0 %v1268
    %1447 = vmatpush.msra.mxu0 %v1265
    %1448 = vmatmul.f32.gmra.mxu0 %v1400
    %v1449 = vpop.f32.mrf.mxu0
    %v1450 = vadd.f32 0.0, %v1449
    %1451 = vdwg.mxu0
    %1452 = vmatpush.msra.mxu0 0.0
    %1453 = vmatpush.msra.mxu0 0.0
    %1454 = vmatpush.msra.mxu0 0.0
    %1455 = vmatpush.msra.mxu0 0.0
    %1456 = vmatpush.msra.mxu0 0.0
    %1457 = vmatpush.msra.mxu0 0.0
    %1458 = vmatpush.msra.mxu0 0.0
    %1459 = vmatpush.msra.mxu0 0.0
    %1460 = vmatpush.msra.mxu0 0.0
    %1461 = vmatpush.msra.mxu0 0.0
    %1462 = vmatpush.msra.mxu0 0.0
    %1463 = vmatpush.msra.mxu0 0.0
    %1464 = vmatpush.msra.mxu0 %v1410
    %1465 = vmatpush.msra.mxu0 %v1272
    %1466 = vmatpush.msra.mxu0 %v1269
    %1467 = vmatpush.msra.mxu0 %v1266
    %1468 = vmatmul.f32.gmra.mxu0 %v1400
    %v1469 = vpop.f32.mrf.mxu0
    %v1470 = vadd.f32 0.0, %v1469
    %1471 = vdwg.mxu0
    %v1472 = vperm.slane %v1430, 0
    %v1473 = vperm.slane %v1450, 0
    %v1474 = vperm.slane %v1470, 0
    %v1475 = vsub.f32 %v1217, %v1472
    %v1476 = vsub.f32 %v1218, %v1473
    %v1477 = vsub.f32 %v1219, %v1474
    %v1478 = vsub.f32 %v1220, %v1472
    %v1479 = vsub.f32 %v1221, %v1473
    %v1480 = vsub.f32 %v1222, %v1474
    %v1481 = vsub.f32 %v1223, %v1472
    %v1482 = vsub.f32 %v1224, %v1473
    %v1483 = vsub.f32 %v1225, %v1474
    %v1484 = vmul.f32 %v1475, %v1279
    %v1485 = vmul.f32 %v1476, %v1279
    %v1486 = vmul.f32 %v1477, %v1279
    %v1487 = vmul.f32 %v1478, %v1284
    %v1488 = vmul.f32 %v1479, %v1284
    %v1489 = vmul.f32 %v1480, %v1284
    %v1490 = vmul.f32 %v1481, %v1289
    %v1491 = vmul.f32 %v1482, %v1289
    %v1492 = vmul.f32 %v1483, %v1289
    %v1493 = vmul.f32 %v1484, %v1484
    %v1494 = vmul.f32 %v1485, %v1485
    %v1495 = vmul.f32 %v1486, %v1486
    %v1496 = vmul.f32 %v1487, %v1487
    %v1497 = vmul.f32 %v1488, %v1488
    %v1498 = vmul.f32 %v1489, %v1489
    %v1499 = vmul.f32 %v1490, %v1490
    %v1500 = vmul.f32 %v1491, %v1491
    %v1501 = vmul.f32 %v1492, %v1492
    %v1502 = vadd.f32 %v1493, %v1496
    %v1503 = vadd.f32 %v1502, %v1499
    %v1504 = vrot.slane %v1503, 4
    %v1505 = vadd.f32 %v1503, %v1504
    %v1506 = vrot.slane %v1505, 2
    %v1507 = vadd.f32 %v1505, %v1506
    %v1508 = vrot.slane %v1507, 1
    %v1509 = vadd.f32 %v1507, %v1508
    %v1510 = vadd.f32 %v1494, %v1497
    %v1511 = vadd.f32 %v1510, %v1500
    %v1512 = vrot.slane %v1511, 4
    %v1513 = vadd.f32 %v1511, %v1512
    %v1514 = vrot.slane %v1513, 2
    %v1515 = vadd.f32 %v1513, %v1514
    %v1516 = vrot.slane %v1515, 1
    %v1517 = vadd.f32 %v1515, %v1516
    %v1518 = vsel %vm799, %v1495, 0.0
    %v1519 = vsel %vm799, %v1498, 0.0
    %v1520 = vadd.f32 %v1518, %v1519
    %v1521 = vsel %vm799, %v1501, 0.0
    %v1522 = vadd.f32 %v1520, %v1521
    %v1523 = vrot.slane %v1522, 4
    %v1524 = vadd.f32 %v1522, %v1523
    %v1525 = vrot.slane %v1524, 2
    %v1526 = vadd.f32 %v1524, %v1525
    %v1527 = vrot.slane %v1526, 1
    %v1528 = vadd.f32 %v1526, %v1527
    %v1530 = vsel %vm799, %v1528, 0
    %1532 = vmatpush.msra.mxu0 %v1244
    %1533 = vmatpush.msra.mxu0 %v1243
    %1534 = vmatpush.msra.mxu0 %v1242
    %1535 = vmatpush.msra.mxu0 %v1241
    %1536 = vmatpush.msra.mxu0 %v1240
    %1537 = vmatpush.msra.mxu0 %v1239
    %1538 = vmatpush.msra.mxu0 %v1238
    %1539 = vmatpush.msra.mxu0 %v1237
    %1540 = vmatpush.msra.mxu0 %v1236
    %1541 = vmatpush.msra.mxu0 %v1235
    %1542 = vmatpush.msra.mxu0 %v1234
    %1543 = vmatpush.msra.mxu0 %v1233
    %1544 = vmatpush.msra.mxu0 %v1232
    %1545 = vmatpush.msra.mxu0 %v1231
    %1546 = vmatpush.msra.mxu0 %v1230
    %1547 = vmatpush.msra.mxu0 %v1229
    %1548 = vmatmul.f32.gmra.mxu0 %v1509
    %v1549 = vpop.f32.mrf.mxu0
    %v1550 = vadd.f32 0.0, %v1549
    %1551 = vdwg.mxu0
    %1552 = vmatpush.msra.mxu0 %v1260
    %1553 = vmatpush.msra.mxu0 %v1259
    %1554 = vmatpush.msra.mxu0 %v1258
    %1555 = vmatpush.msra.mxu0 %v1257
    %1556 = vmatpush.msra.mxu0 %v1256
    %1557 = vmatpush.msra.mxu0 %v1255
    %1558 = vmatpush.msra.mxu0 %v1254
    %1559 = vmatpush.msra.mxu0 %v1253
    %1560 = vmatpush.msra.mxu0 %v1252
    %1561 = vmatpush.msra.mxu0 %v1251
    %1562 = vmatpush.msra.mxu0 %v1250
    %1563 = vmatpush.msra.mxu0 %v1249
    %1564 = vmatpush.msra.mxu0 %v1248
    %1565 = vmatpush.msra.mxu0 %v1247
    %1566 = vmatpush.msra.mxu0 %v1246
    %1567 = vmatpush.msra.mxu0 %v1245
    %1568 = vmatmul.f32.gmra.mxu0 %v1517
    %v1569 = vpop.f32.mrf.mxu0
    %v1570 = vadd.f32 %v1550, %v1569
    %1571 = vdwg.mxu0
    %1572 = vmatpush.msra.mxu0 0.0
    %1573 = vmatpush.msra.mxu0 0.0
    %1574 = vmatpush.msra.mxu0 0.0
    %1575 = vmatpush.msra.mxu0 0.0
    %1576 = vmatpush.msra.mxu0 0.0
    %1577 = vmatpush.msra.mxu0 0.0
    %1578 = vmatpush.msra.mxu0 0.0
    %1579 = vmatpush.msra.mxu0 0.0
    %1580 = vmatpush.msra.mxu0 0.0
    %1581 = vmatpush.msra.mxu0 0.0
    %1582 = vmatpush.msra.mxu0 0.0
    %1583 = vmatpush.msra.mxu0 0.0
    %1584 = vmatpush.msra.mxu0 0.0
    %1585 = vmatpush.msra.mxu0 %v1263
    %1586 = vmatpush.msra.mxu0 %v1262
    %1587 = vmatpush.msra.mxu0 %v1261
    %1588 = vmatmul.f32.gmra.mxu0 %v1530
    %v1589 = vpop.f32.mrf.mxu0
    %v1590 = vadd.f32 %v1570, %v1589
    %1591 = vdwg.mxu0
    %v1592 = vmul.f32 %v1590, %v1396
    %v1593 = vld [vmem:[%s5] sm:$0x1]
    %v1594 = vadd.f32 %v1592, 1e-05
    %v1595 = vrsqrt.pop %v1594
    %v1596 = vmul.f32 %v1595, %v1594
    %v1597 = vmul.f32 %v1596, %v1595
    %v1598 = vmul.f32 0.5, %v1597
    %v1599 = vsub.f32 1.5, %v1598
    %v1600 = vmul.f32 %v1595, %v1599
    %vm1601 = vweird.f32 %v1594
    %vm1602 = vweird.f32 %v1595
    %vm1603 = vmor %vm1601, %vm1602
    %v1604 = vsel %vm1603, %v1595, %v1600
    %v1605 = vmul.f32 %v1593, %v1604
    %v1606 = vld [vmem:[%s6] sm:$0x1]
    %v1607 = vmul.f32 %v1397, %v1605
    %v1608 = vsub.f32 %v1606, %v1607
    %v1610 = vsel %vm1398, %v1605, 0
    %1612 = vmatpush.msra.mxu0 0.0
    %1613 = vmatpush.msra.mxu0 0.0
    %1614 = vmatpush.msra.mxu0 0.0
    %1615 = vmatpush.msra.mxu0 0.0
    %1616 = vmatpush.msra.mxu0 0.0
    %1617 = vmatpush.msra.mxu0 0.0
    %1618 = vmatpush.msra.mxu0 0.0
    %1619 = vmatpush.msra.mxu0 0.0
    %1620 = vmatpush.msra.mxu0 0.0
    %1621 = vmatpush.msra.mxu0 0.0
    %1622 = vmatpush.msra.mxu0 0.0
    %1623 = vmatpush.msra.mxu0 0.0
    %1624 = vmatpush.msra.mxu0 %v1404
    %1625 = vmatpush.msra.mxu0 %v1270
    %1626 = vmatpush.msra.mxu0 %v1267
    %1627 = vmatpush.msra.mxu0 %v1264
    %1628 = vmatmul.f32.gmra.mxu0 %v1610
    %v1629 = vpop.f32.mrf.mxu0
    %v1630 = vadd.f32 0.0, %v1629
    %1631 = vdwg.mxu0
    %1632 = vmatpush.msra.mxu0 0.0
    %1633 = vmatpush.msra.mxu0 0.0
    %1634 = vmatpush.msra.mxu0 0.0
    %1635 = vmatpush.msra.mxu0 0.0
    %1636 = vmatpush.msra.mxu0 0.0
    %1637 = vmatpush.msra.mxu0 0.0
    %1638 = vmatpush.msra.mxu0 0.0
    %1639 = vmatpush.msra.mxu0 0.0
    %1640 = vmatpush.msra.mxu0 0.0
    %1641 = vmatpush.msra.mxu0 0.0
    %1642 = vmatpush.msra.mxu0 0.0
    %1643 = vmatpush.msra.mxu0 0.0
    %1644 = vmatpush.msra.mxu0 %v1407
    %1645 = vmatpush.msra.mxu0 %v1271
    %1646 = vmatpush.msra.mxu0 %v1268
    %1647 = vmatpush.msra.mxu0 %v1265
    %1648 = vmatmul.f32.gmra.mxu0 %v1610
    %v1649 = vpop.f32.mrf.mxu0
    %v1650 = vadd.f32 0.0, %v1649
    %1651 = vdwg.mxu0
    %1652 = vmatpush.msra.mxu0 0.0
    %1653 = vmatpush.msra.mxu0 0.0
    %1654 = vmatpush.msra.mxu0 0.0
    %1655 = vmatpush.msra.mxu0 0.0
    %1656 = vmatpush.msra.mxu0 0.0
    %1657 = vmatpush.msra.mxu0 0.0
    %1658 = vmatpush.msra.mxu0 0.0
    %1659 = vmatpush.msra.mxu0 0.0
    %1660 = vmatpush.msra.mxu0 0.0
    %1661 = vmatpush.msra.mxu0 0.0
    %1662 = vmatpush.msra.mxu0 0.0
    %1663 = vmatpush.msra.mxu0 0.0
    %1664 = vmatpush.msra.mxu0 %v1410
    %1665 = vmatpush.msra.mxu0 %v1272
    %1666 = vmatpush.msra.mxu0 %v1269
    %1667 = vmatpush.msra.mxu0 %v1266
    %1668 = vmatmul.f32.gmra.mxu0 %v1610
    %v1669 = vpop.f32.mrf.mxu0
    %v1670 = vadd.f32 0.0, %v1669
    %1671 = vdwg.mxu0
    %v1672 = vperm.slane %v1630, 0
    %v1673 = vperm.slane %v1650, 0
    %v1674 = vperm.slane %v1670, 0
    %v1675 = vmul.f32 %v1217, %v1672
    %v1676 = vmul.f32 %v1218, %v1673
    %v1677 = vmul.f32 %v1219, %v1674
    %v1678 = vmul.f32 %v1220, %v1672
    %v1679 = vmul.f32 %v1221, %v1673
    %v1680 = vmul.f32 %v1222, %v1674
    %v1681 = vmul.f32 %v1223, %v1672
    %v1682 = vmul.f32 %v1224, %v1673
    %v1683 = vmul.f32 %v1225, %v1674
    %v1685 = vsel %vm1398, %v1608, 0
    %1687 = vmatpush.msra.mxu0 0.0
    %1688 = vmatpush.msra.mxu0 0.0
    %1689 = vmatpush.msra.mxu0 0.0
    %1690 = vmatpush.msra.mxu0 0.0
    %1691 = vmatpush.msra.mxu0 0.0
    %1692 = vmatpush.msra.mxu0 0.0
    %1693 = vmatpush.msra.mxu0 0.0
    %1694 = vmatpush.msra.mxu0 0.0
    %1695 = vmatpush.msra.mxu0 0.0
    %1696 = vmatpush.msra.mxu0 0.0
    %1697 = vmatpush.msra.mxu0 0.0
    %1698 = vmatpush.msra.mxu0 0.0
    %1699 = vmatpush.msra.mxu0 %v1404
    %1700 = vmatpush.msra.mxu0 %v1270
    %1701 = vmatpush.msra.mxu0 %v1267
    %1702 = vmatpush.msra.mxu0 %v1264
    %1703 = vmatmul.f32.gmra.mxu0 %v1685
    %v1704 = vpop.f32.mrf.mxu0
    %v1705 = vadd.f32 0.0, %v1704
    %1706 = vdwg.mxu0
    %1707 = vmatpush.msra.mxu0 0.0
    %1708 = vmatpush.msra.mxu0 0.0
    %1709 = vmatpush.msra.mxu0 0.0
    %1710 = vmatpush.msra.mxu0 0.0
    %1711 = vmatpush.msra.mxu0 0.0
    %1712 = vmatpush.msra.mxu0 0.0
    %1713 = vmatpush.msra.mxu0 0.0
    %1714 = vmatpush.msra.mxu0 0.0
    %1715 = vmatpush.msra.mxu0 0.0
    %1716 = vmatpush.msra.mxu0 0.0
    %1717 = vmatpush.msra.mxu0 0.0
    %1718 = vmatpush.msra.mxu0 0.0
    %1719 = vmatpush.msra.mxu0 %v1407
    %1720 = vmatpush.msra.mxu0 %v1271
    %1721 = vmatpush.msra.mxu0 %v1268
    %1722 = vmatpush.msra.mxu0 %v1265
    %1723 = vmatmul.f32.gmra.mxu0 %v1685
    %v1724 = vpop.f32.mrf.mxu0
    %v1725 = vadd.f32 0.0, %v1724
    %1726 = vdwg.mxu0
    %1727 = vmatpush.msra.mxu0 0.0
    %1728 = vmatpush.msra.mxu0 0.0
    %1729 = vmatpush.msra.mxu0 0.0
    %1730 = vmatpush.msra.mxu0 0.0
    %1731 = vmatpush.msra.mxu0 0.0
    %1732 = vmatpush.msra.mxu0 0.0
    %1733 = vmatpush.msra.mxu0 0.0
    %1734 = vmatpush.msra.mxu0 0.0
    %1735 = vmatpush.msra.mxu0 0.0
    %1736 = vmatpush.msra.mxu0 0.0
    %1737 = vmatpush.msra.mxu0 0.0
    %1738 = vmatpush.msra.mxu0 0.0
    %1739 = vmatpush.msra.mxu0 %v1410
    %1740 = vmatpush.msra.mxu0 %v1272
    %1741 = vmatpush.msra.mxu0 %v1269
    %1742 = vmatpush.msra.mxu0 %v1266
    %1743 = vmatmul.f32.gmra.mxu0 %v1685
    %v1744 = vpop.f32.mrf.mxu0
    %v1745 = vadd.f32 0.0, %v1744
    %1746 = vdwg.mxu0
    %v1747 = vperm.slane %v1705, 0
    %v1748 = vperm.slane %v1725, 0
    %v1749 = vperm.slane %v1745, 0
    %v1750 = vadd.f32 %v1675, %v1747
    %v1751 = vadd.f32 %v1676, %v1748
    %v1752 = vadd.f32 %v1677, %v1749
    %v1753 = vadd.f32 %v1678, %v1747
    %v1754 = vadd.f32 %v1679, %v1748
    %v1755 = vadd.f32 %v1680, %v1749
    %v1756 = vadd.f32 %v1681, %v1747
    %v1757 = vadd.f32 %v1682, %v1748
    %v1758 = vadd.f32 %v1683, %v1749
    %v1759 = vmax.f32 %v1750, 0.0
    %v1760 = vmax.f32 %v1751, 0.0
    %v1761 = vmax.f32 %v1752, 0.0
    %v1762 = vmax.f32 %v1753, 0.0
    %v1763 = vmax.f32 %v1754, 0.0
    %v1764 = vmax.f32 %v1755, 0.0
    %v1765 = vmax.f32 %v1756, 0.0
    %v1766 = vmax.f32 %v1757, 0.0
    %v1767 = vmax.f32 %v1758, 0.0
    %v1768 = vld [vmem:[%s7] sm:$0xff]
    %v1769 = vld [vmem:[%s7 + $0x8] sm:$0xff]
    %v1770 = vld [vmem:[%s7 + $0x10] sm:$0xff]
    %v1771 = vld [vmem:[%s7 + $0x18] sm:$0xff]
    %v1772 = vld [vmem:[%s7 + $0x20] sm:$0xff]
    %v1773 = vld [vmem:[%s7 + $0x28] sm:$0xff]
    %v1774 = vld [vmem:[%s7 + $0x30] sm:$0xff]
    %v1775 = vld [vmem:[%s7 + $0x38] sm:$0xff]
    %v1776 = vld [vmem:[%s7 + $0x40] sm:$0xff]
    %v1777 = vld [vmem:[%s7 + $0x48] sm:$0xff]
    %v1778 = vld [vmem:[%s7 + $0x50] sm:$0xff]
    %v1779 = vld [vmem:[%s7 + $0x58] sm:$0xff]
    %v1780 = vld [vmem:[%s7 + $0x60] sm:$0xff]
    %v1781 = vld [vmem:[%s7 + $0x68] sm:$0xff]
    %v1782 = vld [vmem:[%s7 + $0x70] sm:$0xff]
    %v1783 = vld [vmem:[%s7 + $0x78] sm:$0xff]
    %v1784 = vld [vmem:[%s7 + $0x80] sm:$0xff]
    %v1785 = vld [vmem:[%s7 + $0x88] sm:$0xff]
    %v1786 = vld [vmem:[%s7 + $0x90] sm:$0xff]
    %v1787 = vld [vmem:[%s7 + $0x98] sm:$0xff]
    %v1788 = vld [vmem:[%s7 + $0xa0] sm:$0xff]
    %v1789 = vld [vmem:[%s7 + $0xa8] sm:$0xff]
    %v1790 = vld [vmem:[%s7 + $0xb0] sm:$0xff]
    %v1791 = vld [vmem:[%s7 + $0xb8] sm:$0xff]
    %v1792 = vld [vmem:[%s7 + $0xc0] sm:$0xff]
    %v1793 = vld [vmem:[%s7 + $0xc8] sm:$0xff]
    %v1794 = vld [vmem:[%s7 + $0xd0] sm:$0xff]
    %v1795 = vld [vmem:[%s7 + $0xd8] sm:$0xff]
    %v1796 = vld [vmem:[%s7 + $0xe0] sm:$0xff]
    %v1797 = vld [vmem:[%s7 + $0xe8] sm:$0xff]
    %v1798 = vld [vmem:[%s7 + $0xf0] sm:$0xff]
    %v1799 = vld [vmem:[%s7 + $0xf8] sm:$0xff]
    %v1800 = vld [vmem:[%s7 + $0x100] sm:$0xff]
    %v1801 = vld [vmem:[%s7 + $0x108] sm:$0xff]
    %v1802 = vld [vmem:[%s7 + $0x110] sm:$0xff]
    %v1804 = vsel %vm799, %v1761, 0
    %v1807 = vsel %vm799, %v1764, 0
    %v1810 = vsel %vm799, %v1767, 0
    %1812 = vmatpush.msra.mxu0 %v1783
    %1813 = vmatpush.msra.mxu0 %v1782
    %1814 = vmatpush.msra.mxu0 %v1781
    %1815 = vmatpush.msra.mxu0 %v1780
    %1816 = vmatpush.msra.mxu0 %v1779
    %1817 = vmatpush.msra.mxu0 %v1778
    %1818 = vmatpush.msra.mxu0 %v1777
    %1819 = vmatpush.msra.mxu0 %v1776
    %1820 = vmatpush.msra.mxu0 %v1775
    %1821 = vmatpush.msra.mxu0 %v1774
    %1822 = vmatpush.msra.mxu0 %v1773
    %1823 = vmatpush.msra.mxu0 %v1772
    %1824 = vmatpush.msra.mxu0 %v1771
    %1825 = vmatpush.msra.mxu0 %v1770
    %1826 = vmatpush.msra.mxu0 %v1769
    %1827 = vmatpush.msra.mxu0 %v1768
    %1828 = vmatmul.f32.gmra.mxu0 %v1759
    %v1829 = vpop.f32.mrf.mxu0
    %v1830 = vadd.f32 0.0, %v1829
    %1831 = vmatmul.f32.gmra.mxu0 %v1762
    %v1832 = vpop.f32.mrf.mxu0
    %v1833 = vadd.f32 0.0, %v1832
    %1834 = vmatmul.f32.gmra.mxu0 %v1765
    %v1835 = vpop.f32.mrf.mxu0
    %v1836 = vadd.f32 0.0, %v1835
    %1837 = vdwg.mxu0
    %1838 = vmatpush.msra.mxu0 %v1799
    %1839 = vmatpush.msra.mxu0 %v1798
    %1840 = vmatpush.msra.mxu0 %v1797
    %1841 = vmatpush.msra.mxu0 %v1796
    %1842 = vmatpush.msra.mxu0 %v1795
    %1843 = vmatpush.msra.mxu0 %v1794
    %1844 = vmatpush.msra.mxu0 %v1793
    %1845 = vmatpush.msra.mxu0 %v1792
    %1846 = vmatpush.msra.mxu0 %v1791
    %1847 = vmatpush.msra.mxu0 %v1790
    %1848 = vmatpush.msra.mxu0 %v1789
    %1849 = vmatpush.msra.mxu0 %v1788
    %1850 = vmatpush.msra.mxu0 %v1787
    %1851 = vmatpush.msra.mxu0 %v1786
    %1852 = vmatpush.msra.mxu0 %v1785
    %1853 = vmatpush.msra.mxu0 %v1784
    %1854 = vmatmul.f32.gmra.mxu0 %v1760
    %v1855 = vpop.f32.mrf.mxu0
    %v1856 = vadd.f32 %v1830, %v1855
    %1857 = vmatmul.f32.gmra.mxu0 %v1763
    %v1858 = vpop.f32.mrf.mxu0
    %v1859 = vadd.f32 %v1833, %v1858
    %1860 = vmatmul.f32.gmra.mxu0 %v1766
    %v1861 = vpop.f32.mrf.mxu0
    %v1862 = vadd.f32 %v1836, %v1861
    %1863 = vdwg.mxu0
    %1864 = vmatpush.msra.mxu0 0.0
    %1865 = vmatpush.msra.mxu0 0.0
    %1866 = vmatpush.msra.mxu0 0.0
    %1867 = vmatpush.msra.mxu0 0.0
    %1868 = vmatpush.msra.mxu0 0.0
    %1869 = vmatpush.msra.mxu0 0.0
    %1870 = vmatpush.msra.mxu0 0.0
    %1871 = vmatpush.msra.mxu0 0.0
    %1872 = vmatpush.msra.mxu0 0.0
    %1873 = vmatpush.msra.mxu0 0.0
    %1874 = vmatpush.msra.mxu0 0.0
    %1875 = vmatpush.msra.mxu0 0.0
    %1876 = vmatpush.msra.mxu0 0.0
    %1877 = vmatpush.msra.mxu0 %v1802
    %1878 = vmatpush.msra.mxu0 %v1801
    %1879 = vmatpush.msra.mxu0 %v1800
    %1880 = vmatmul.f32.gmra.mxu0 %v1804
    %v1881 = vpop.f32.mrf.mxu0
    %v1882 = vadd.f32 %v1856, %v1881
    %1883 = vmatmul.f32.gmra.mxu0 %v1807
    %v1884 = vpop.f32.mrf.mxu0
    %v1885 = vadd.f32 %v1859, %v1884
    %1886 = vmatmul.f32.gmra.mxu0 %v1810
    %v1887 = vpop.f32.mrf.mxu0
    %v1888 = vadd.f32 %v1862, %v1887
    %1889 = vdwg.mxu0
    %1890 = vst.msk [vmem:[#allocation4] sm:$0xff] %vm1398, %v1882
    %1891 = vst.msk [vmem:[#allocation4 + $0x8] sm:$0xff] %vm1398, %v1885
    %1892 = vst.msk [vmem:[#allocation4 + $0x10] sm:$0xff] %vm1398, %v1888
    %s1893 = scalar_lea.vmem %s7, 280
    %v1894 = vld [vmem:[%s1893] sm:$0xff]
    %v1895 = vld [vmem:[%s1893 + $0x8] sm:$0xff]
    %v1896 = vld [vmem:[%s1893 + $0x10] sm:$0xff]
    %v1897 = vld [vmem:[%s1893 + $0x18] sm:$0xff]
    %v1898 = vld [vmem:[%s1893 + $0x20] sm:$0xff]
    %v1899 = vld [vmem:[%s1893 + $0x28] sm:$0xff]
    %v1900 = vld [vmem:[%s1893 + $0x30] sm:$0xff]
    %v1901 = vld [vmem:[%s1893 + $0x38] sm:$0xff]
    %v1902 = vld [vmem:[%s1893 + $0x40] sm:$0xff]
    %v1903 = vld [vmem:[%s1893 + $0x48] sm:$0xff]
    %v1904 = vld [vmem:[%s1893 + $0x50] sm:$0xff]
    %v1905 = vld [vmem:[%s1893 + $0x58] sm:$0xff]
    %v1906 = vld [vmem:[%s1893 + $0x60] sm:$0xff]
    %v1907 = vld [vmem:[%s1893 + $0x68] sm:$0xff]
    %v1908 = vld [vmem:[%s1893 + $0x70] sm:$0xff]
    %v1909 = vld [vmem:[%s1893 + $0x78] sm:$0xff]
    %v1910 = vld [vmem:[%s1893 + $0x80] sm:$0xff]
    %v1911 = vld [vmem:[%s1893 + $0x88] sm:$0xff]
    %v1912 = vld [vmem:[%s1893 + $0x90] sm:$0xff]
    %v1913 = vld [vmem:[%s1893 + $0x98] sm:$0xff]
    %v1914 = vld [vmem:[%s1893 + $0xa0] sm:$0xff]
    %v1915 = vld [vmem:[%s1893 + $0xa8] sm:$0xff]
    %v1916 = vld [vmem:[%s1893 + $0xb0] sm:$0xff]
    %v1917 = vld [vmem:[%s1893 + $0xb8] sm:$0xff]
    %v1918 = vld [vmem:[%s1893 + $0xc0] sm:$0xff]
    %v1919 = vld [vmem:[%s1893 + $0xc8] sm:$0xff]
    %v1920 = vld [vmem:[%s1893 + $0xd0] sm:$0xff]
    %v1921 = vld [vmem:[%s1893 + $0xd8] sm:$0xff]
    %v1922 = vld [vmem:[%s1893 + $0xe0] sm:$0xff]
    %v1923 = vld [vmem:[%s1893 + $0xe8] sm:$0xff]
    %v1924 = vld [vmem:[%s1893 + $0xf0] sm:$0xff]
    %v1925 = vld [vmem:[%s1893 + $0xf8] sm:$0xff]
    %v1926 = vld [vmem:[%s1893 + $0x100] sm:$0xff]
    %v1927 = vld [vmem:[%s1893 + $0x108] sm:$0xff]
    %v1928 = vld [vmem:[%s1893 + $0x110] sm:$0xff]
    %1929 = vmatpush.msra.mxu0 %v1909
    %1930 = vmatpush.msra.mxu0 %v1908
    %1931 = vmatpush.msra.mxu0 %v1907
    %1932 = vmatpush.msra.mxu0 %v1906
    %1933 = vmatpush.msra.mxu0 %v1905
    %1934 = vmatpush.msra.mxu0 %v1904
    %1935 = vmatpush.msra.mxu0 %v1903
    %1936 = vmatpush.msra.mxu0 %v1902
    %1937 = vmatpush.msra.mxu0 %v1901
    %1938 = vmatpush.msra.mxu0 %v1900
    %1939 = vmatpush.msra.mxu0 %v1899
    %1940 = vmatpush.msra.mxu0 %v1898
    %1941 = vmatpush.msra.mxu0 %v1897
    %1942 = vmatpush.msra.mxu0 %v1896
    %1943 = vmatpush.msra.mxu0 %v1895
    %1944 = vmatpush.msra.mxu0 %v1894
    %1945 = vmatmul.f32.gmra.mxu0 %v1759
    %v1946 = vpop.f32.mrf.mxu0
    %v1947 = vadd.f32 0.0, %v1946
    %1948 = vmatmul.f32.gmra.mxu0 %v1762
    %v1949 = vpop.f32.mrf.mxu0
    %v1950 = vadd.f32 0.0, %v1949
    %1951 = vmatmul.f32.gmra.mxu0 %v1765
    %v1952 = vpop.f32.mrf.mxu0
    %v1953 = vadd.f32 0.0, %v1952
    %1954 = vdwg.mxu0
    %1955 = vmatpush.msra.mxu0 %v1925
    %1956 = vmatpush.msra.mxu0 %v1924
    %1957 = vmatpush.msra.mxu0 %v1923
    %1958 = vmatpush.msra.mxu0 %v1922
    %1959 = vmatpush.msra.mxu0 %v1921
    %1960 = vmatpush.msra.mxu0 %v1920
    %1961 = vmatpush.msra.mxu0 %v1919
    %1962 = vmatpush.msra.mxu0 %v1918
    %1963 = vmatpush.msra.mxu0 %v1917
    %1964 = vmatpush.msra.mxu0 %v1916
    %1965 = vmatpush.msra.mxu0 %v1915
    %1966 = vmatpush.msra.mxu0 %v1914
    %1967 = vmatpush.msra.mxu0 %v1913
    %1968 = vmatpush.msra.mxu0 %v1912
    %1969 = vmatpush.msra.mxu0 %v1911
    %1970 = vmatpush.msra.mxu0 %v1910
    %1971 = vmatmul.f32.gmra.mxu0 %v1760
    %v1972 = vpop.f32.mrf.mxu0
    %v1973 = vadd.f32 %v1947, %v1972
    %1974 = vmatmul.f32.gmra.mxu0 %v1763
    %v1975 = vpop.f32.mrf.mxu0
    %v1976 = vadd.f32 %v1950, %v1975
    %1977 = vmatmul.f32.gmra.mxu0 %v1766
    %v1978 = vpop.f32.mrf.mxu0
    %v1979 = vadd.f32 %v1953, %v1978
    %1980 = vdwg.mxu0
    %1981 = vmatpush.msra.mxu0 0.0
    %1982 = vmatpush.msra.mxu0 0.0
    %1983 = vmatpush.msra.mxu0 0.0
    %1984 = vmatpush.msra.mxu0 0.0
    %1985 = vmatpush.msra.mxu0 0.0
    %1986 = vmatpush.msra.mxu0 0.0
    %1987 = vmatpush.msra.mxu0 0.0
    %1988 = vmatpush.msra.mxu0 0.0
    %1989 = vmatpush.msra.mxu0 0.0
    %1990 = vmatpush.msra.mxu0 0.0
    %1991 = vmatpush.msra.mxu0 0.0
    %1992 = vmatpush.msra.mxu0 0.0
    %1993 = vmatpush.msra.mxu0 0.0
    %1994 = vmatpush.msra.mxu0 %v1928
    %1995 = vmatpush.msra.mxu0 %v1927
    %1996 = vmatpush.msra.mxu0 %v1926
    %1997 = vmatmul.f32.gmra.mxu0 %v1804
    %v1998 = vpop.f32.mrf.mxu0
    %v1999 = vadd.f32 %v1973, %v1998
    %2000 = vmatmul.f32.gmra.mxu0 %v1807
    %v2001 = vpop.f32.mrf.mxu0
    %v2002 = vadd.f32 %v1976, %v2001
    %2003 = vmatmul.f32.gmra.mxu0 %v1810
    %v2004 = vpop.f32.mrf.mxu0
    %v2005 = vadd.f32 %v1979, %v2004
    %2006 = vdwg.mxu0
    %2007 = vst.msk [vmem:[#allocation4 + $0x18] sm:$0xff] %vm1398, %v1999
    %2008 = vst.msk [vmem:[#allocation4 + $0x20] sm:$0xff] %vm1398, %v2002
    %2009 = vst.msk [vmem:[#allocation4 + $0x28] sm:$0xff] %vm1398, %v2005
    %s2010 = scalar_lea.vmem %s7, 560
    %v2011 = vld [vmem:[%s2010] sm:$0xff]
    %v2012 = vld [vmem:[%s2010 + $0x8] sm:$0xff]
    %v2013 = vld [vmem:[%s2010 + $0x10] sm:$0xff]
    %v2014 = vld [vmem:[%s2010 + $0x18] sm:$0xff]
    %v2015 = vld [vmem:[%s2010 + $0x20] sm:$0xff]
    %v2016 = vld [vmem:[%s2010 + $0x28] sm:$0xff]
    %v2017 = vld [vmem:[%s2010 + $0x30] sm:$0xff]
    %v2018 = vld [vmem:[%s2010 + $0x38] sm:$0xff]
    %v2019 = vld [vmem:[%s2010 + $0x40] sm:$0xff]
    %v2020 = vld [vmem:[%s2010 + $0x48] sm:$0xff]
    %v2021 = vld [vmem:[%s2010 + $0x50] sm:$0xff]
    %v2022 = vld [vmem:[%s2010 + $0x58] sm:$0xff]
    %v2023 = vld [vmem:[%s2010 + $0x60] sm:$0xff]
    %v2024 = vld [vmem:[%s2010 + $0x68] sm:$0xff]
    %v2025 = vld [vmem:[%s2010 + $0x70] sm:$0xff]
    %v2026 = vld [vmem:[%s2010 + $0x78] sm:$0xff]
    %v2027 = vld [vmem:[%s2010 + $0x80] sm:$0xff]
    %v2028 = vld [vmem:[%s2010 + $0x88] sm:$0xff]
    %v2029 = vld [vmem:[%s2010 + $0x90] sm:$0xff]
    %v2030 = vld [vmem:[%s2010 + $0x98] sm:$0xff]
    %v2031 = vld [vmem:[%s2010 + $0xa0] sm:$0xff]
    %v2032 = vld [vmem:[%s2010 + $0xa8] sm:$0xff]
    %v2033 = vld [vmem:[%s2010 + $0xb0] sm:$0xff]
    %v2034 = vld [vmem:[%s2010 + $0xb8] sm:$0xff]
    %v2035 = vld [vmem:[%s2010 + $0xc0] sm:$0xff]
    %v2036 = vld [vmem:[%s2010 + $0xc8] sm:$0xff]
    %v2037 = vld [vmem:[%s2010 + $0xd0] sm:$0xff]
    %v2038 = vld [vmem:[%s2010 + $0xd8] sm:$0xff]
    %v2039 = vld [vmem:[%s2010 + $0xe0] sm:$0xff]
    %v2040 = vld [vmem:[%s2010 + $0xe8] sm:$0xff]
    %v2041 = vld [vmem:[%s2010 + $0xf0] sm:$0xff]
    %v2042 = vld [vmem:[%s2010 + $0xf8] sm:$0xff]
    %v2043 = vld [vmem:[%s2010 + $0x100] sm:$0xff]
    %v2044 = vld [vmem:[%s2010 + $0x108] sm:$0xff]
    %v2045 = vld [vmem:[%s2010 + $0x110] sm:$0xff]
    %2046 = vmatpush.msra.mxu0 %v2026
    %2047 = vmatpush.msra.mxu0 %v2025
    %2048 = vmatpush.msra.mxu0 %v2024
    %2049 = vmatpush.msra.mxu0 %v2023
    %2050 = vmatpush.msra.mxu0 %v2022
    %2051 = vmatpush.msra.mxu0 %v2021
    %2052 = vmatpush.msra.mxu0 %v2020
    %2053 = vmatpush.msra.mxu0 %v2019
    %2054 = vmatpush.msra.mxu0 %v2018
    %2055 = vmatpush.msra.mxu0 %v2017
    %2056 = vmatpush.msra.mxu0 %v2016
    %2057 = vmatpush.msra.mxu0 %v2015
    %2058 = vmatpush.msra.mxu0 %v2014
    %2059 = vmatpush.msra.mxu0 %v2013
    %2060 = vmatpush.msra.mxu0 %v2012
    %2061 = vmatpush.msra.mxu0 %v2011
    %2062 = vmatmul.f32.gmra.mxu0 %v1759
    %v2063 = vpop.f32.mrf.mxu0
    %v2064 = vadd.f32 0.0, %v2063
    %2065 = vmatmul.f32.gmra.mxu0 %v1762
    %v2066 = vpop.f32.mrf.mxu0
    %v2067 = vadd.f32 0.0, %v2066
    %2068 = vmatmul.f32.gmra.mxu0 %v1765
    %v2069 = vpop.f32.mrf.mxu0
    %v2070 = vadd.f32 0.0, %v2069
    %2071 = vdwg.mxu0
    %2072 = vmatpush.msra.mxu0 %v2042
    %2073 = vmatpush.msra.mxu0 %v2041
    %2074 = vmatpush.msra.mxu0 %v2040
    %2075 = vmatpush.msra.mxu0 %v2039
    %2076 = vmatpush.msra.mxu0 %v2038
    %2077 = vmatpush.msra.mxu0 %v2037
    %2078 = vmatpush.msra.mxu0 %v2036
    %2079 = vmatpush.msra.mxu0 %v2035
    %2080 = vmatpush.msra.mxu0 %v2034
    %2081 = vmatpush.msra.mxu0 %v2033
    %2082 = vmatpush.msra.mxu0 %v2032
    %2083 = vmatpush.msra.mxu0 %v2031
    %2084 = vmatpush.msra.mxu0 %v2030
    %2085 = vmatpush.msra.mxu0 %v2029
    %2086 = vmatpush.msra.mxu0 %v2028
    %2087 = vmatpush.msra.mxu0 %v2027
    %2088 = vmatmul.f32.gmra.mxu0 %v1760
    %v2089 = vpop.f32.mrf.mxu0
    %v2090 = vadd.f32 %v2064, %v2089
    %2091 = vmatmul.f32.gmra.mxu0 %v1763
    %v2092 = vpop.f32.mrf.mxu0
    %v2093 = vadd.f32 %v2067, %v2092
    %2094 = vmatmul.f32.gmra.mxu0 %v1766
    %v2095 = vpop.f32.mrf.mxu0
    %v2096 = vadd.f32 %v2070, %v2095
    %2097 = vdwg.mxu0
    %2098 = vmatpush.msra.mxu0 0.0
    %2099 = vmatpush.msra.mxu0 0.0
    %2100 = vmatpush.msra.mxu0 0.0
    %2101 = vmatpush.msra.mxu0 0.0
    %2102 = vmatpush.msra.mxu0 0.0
    %2103 = vmatpush.msra.mxu0 0.0
    %2104 = vmatpush.msra.mxu0 0.0
    %2105 = vmatpush.msra.mxu0 0.0
    %2106 = vmatpush.msra.mxu0 0.0
    %2107 = vmatpush.msra.mxu0 0.0
    %2108 = vmatpush.msra.mxu0 0.0
    %2109 = vmatpush.msra.mxu0 0.0
    %2110 = vmatpush.msra.mxu0 0.0
    %2111 = vmatpush.msra.mxu0 %v2045
    %2112 = vmatpush.msra.mxu0 %v2044
    %2113 = vmatpush.msra.mxu0 %v2043
    %2114 = vmatmul.f32.gmra.mxu0 %v1804
    %v2115 = vpop.f32.mrf.mxu0
    %v2116 = vadd.f32 %v2090, %v2115
    %2117 = vmatmul.f32.gmra.mxu0 %v1807
    %v2118 = vpop.f32.mrf.mxu0
    %v2119 = vadd.f32 %v2093, %v2118
    %2120 = vmatmul.f32.gmra.mxu0 %v1810
    %v2121 = vpop.f32.mrf.mxu0
    %v2122 = vadd.f32 %v2096, %v2121
    %2123 = vdwg.mxu0
    %2124 = vst.msk [vmem:[#allocation4 + $0x30] sm:$0xff] %vm1398, %v2116
    %2125 = vst.msk [vmem:[#allocation4 + $0x38] sm:$0xff] %vm1398, %v2119
    %2126 = vst.msk [vmem:[#allocation4 + $0x40] sm:$0xff] %vm1398, %v2122
    %v2127 = vld [vmem:[%s13] sm:$0xff]
    %v2128 = vld [vmem:[%s13 + $0x8] sm:$0xff]
    %v2129 = vld [vmem:[%s13 + $0x10] sm:$0xff]
    %v2130 = vld [vmem:[%s13 + $0x18] sm:$0xff]
    %v2131 = vld [vmem:[%s13 + $0x20] sm:$0xff]
    %v2132 = vld [vmem:[%s13 + $0x28] sm:$0xff]
    %v2133 = vld [vmem:[%s13 + $0x30] sm:$0xff]
    %v2134 = vld [vmem:[#allocation4] sm:$0xff]
    %v2135 = vld [vmem:[#allocation4 + $0x8] sm:$0xff]
    %v2136 = vld [vmem:[#allocation4 + $0x10] sm:$0xff]
    %v2137 = vld [vmem:[#allocation4 + $0x18] sm:$0xff]
    %v2138 = vld [vmem:[#allocation4 + $0x20] sm:$0xff]
    %v2139 = vld [vmem:[#allocation4 + $0x28] sm:$0xff]
    %v2140 = vld [vmem:[#allocation4 + $0x30] sm:$0xff]
    %v2141 = vld [vmem:[#allocation4 + $0x38] sm:$0xff]
    %v2142 = vld [vmem:[#allocation4 + $0x40] sm:$0xff]
    %vm2143 = vcmask 588800
    %v2145 = vsel %vm2143, %v2127, 0
    %v2148 = vsel %vm2143, %v2128, 0
    %v2151 = vsel %vm2143, %v2129, 0
    %v2154 = vsel %vm2143, %v2130, 0
    %v2157 = vsel %vm2143, %v2131, 0
    %v2160 = vsel %vm2143, %v2132, 0
    %v2163 = vsel %vm2143, %v2133, 0
    %2165 = vmatpush.msra.mxu0 0.0
    %2166 = vmatpush.msra.mxu0 0.0
    %2167 = vmatpush.msra.mxu0 0.0
    %2168 = vmatpush.msra.mxu0 0.0
    %2169 = vmatpush.msra.mxu0 0.0
    %2170 = vmatpush.msra.mxu0 0.0
    %2171 = vmatpush.msra.mxu0 0.0
    %2172 = vmatpush.msra.mxu0 %v2142
    %2173 = vmatpush.msra.mxu0 %v2141
    %2174 = vmatpush.msra.mxu0 %v2140
    %2175 = vmatpush.msra.mxu0 %v2139
    %2176 = vmatpush.msra.mxu0 %v2138
    %2177 = vmatpush.msra.mxu0 %v2137
    %2178 = vmatpush.msra.mxu0 %v2136
    %2179 = vmatpush.msra.mxu0 %v2135
    %2180 = vmatpush.msra.mxu0 %v2134
    %2181 = vmatmul.f32.gmra.mxu0 %v2145
    %v2182 = vpop.f32.mrf.mxu0
    %v2183 = vadd.f32 0.0, %v2182
    %2184 = vmatmul.f32.gmra.mxu0 %v2148
    %v2185 = vpop.f32.mrf.mxu0
    %v2186 = vadd.f32 0.0, %v2185
    %2187 = vmatmul.f32.gmra.mxu0 %v2151
    %v2188 = vpop.f32.mrf.mxu0
    %v2189 = vadd.f32 0.0, %v2188
    %2190 = vmatmul.f32.gmra.mxu0 %v2154
    %v2191 = vpop.f32.mrf.mxu0
    %v2192 = vadd.f32 0.0, %v2191
    %2193 = vmatmul.f32.gmra.mxu0 %v2157
    %v2194 = vpop.f32.mrf.mxu0
    %v2195 = vadd.f32 0.0, %v2194
    %2196 = vmatmul.f32.gmra.mxu0 %v2160
    %v2197 = vpop.f32.mrf.mxu0
    %v2198 = vadd.f32 0.0, %v2197
    %2199 = vmatmul.f32.gmra.mxu0 %v2163
    %v2200 = vpop.f32.mrf.mxu0
    %v2201 = vadd.f32 0.0, %v2200
    %2202 = vdwg.mxu0
    %v2203 = vtanh.pop %v2183
    %v2204 = vtanh.pop %v2186
    %v2205 = vtanh.pop %v2189
    %v2206 = vtanh.pop %v2192
    %v2207 = vtanh.pop %v2195
    %v2208 = vtanh.pop %v2198
    %v2209 = vtanh.pop %v2201
    %2210 = vst.msk [vmem:[#allocation5] sm:$0xff] %vm1398, %v2203
    %2211 = vst.msk [vmem:[#allocation5 + $0x8] sm:$0xff] %vm1398, %v2204
    %2212 = vst.msk [vmem:[#allocation5 + $0x10] sm:$0xff] %vm1398, %v2205
    %2213 = vst.msk [vmem:[#allocation5 + $0x18] sm:$0xff] %vm1398, %v2206
    %2214 = vst.msk [vmem:[#allocation5 + $0x20] sm:$0xff] %vm1398, %v2207
    %2215 = vst.msk [vmem:[#allocation5 + $0x28] sm:$0xff] %vm1398, %v2208
    %2216 = vst.msk [vmem:[#allocation5 + $0x30] sm:$0xff] %vm1398, %v2209
    // Predicated region
    $region58: #{dc_gen_t2_forward.1} parent=1 // pred_check
      _
    $region59: #{dc_gen_t2_forward.1} parent=1 // pred_check_branch
      %2218 = sbr.rel (0) target = $region61
    $region60: #{dc_gen_t2_forward.1} parent=1 // pred_region
      %2220 = vsyncadd [#allocation6], 0
      %s2221 = sshll.u32 [#allocation5], 4
      %s2222 = int_to_ptr.vmem [resolvable:$true] %s2221
      %s2223 = sshll.u32 %s14, 4
      %s2224 = int_to_ptr.hbm [resolvable:$true] %s2223
      %2229 = dma.vmem_to_hbm [thread:$0]  %s2222, 896, %s2224, [#allocation6], 128, 128, 8
    $region61: #{dc_gen_t2_forward.1} parent=1 // pred_fallthru
      _
    // Predicated region
    $region62: #{dc_gen_t2_forward.1} parent=1 // pred_check
      _
    $region63: #{dc_gen_t2_forward.1} parent=1 // pred_check_branch
      %2231 = sbr.rel (0) target = $region65
    $region64: #{dc_gen_t2_forward.1} parent=1 // pred_region
      %2233 = dma.done [#allocation6], 896
    $region65: #{dc_gen_t2_forward.1} parent=1 // pred_fallthru
      _
    %2234 = vsyncpa [#allocation6], 1

</llo_original>
